<compile_context>
chip_gen: v7x
topology: tpu7x:2x2x1
jax: 0.10.0
libtpu: 0.0.40
codegen_flags: <defaults>
</compile_context>

<pallas_src>
import jax
import jax.numpy as jnp
from jax import lax
from jax.experimental import pallas as pl
from jax.experimental.pallas import tpu as pltpu


def _make_stack_kernel(H, W, C, Crh, L, R):
    """R = rows per block = batch_per_block * H; slab layout is (R, W*C)."""
    WC = W * C

    def kernel(x_ref, w1_ref, w2_ref, o_ref):
        # x_ref : (R, W*C)            lane-dense activation slab
        # w1_ref: (L, 9*W*C, W*Crh)   block-diag-expanded 3x3 conv weights
        # w2_ref: (L, W*Crh, W*C)     block-diag-expanded 1x1 conv weights
        # o_ref : (R, W*C)
        cur = x_ref[...].astype(jnp.float32)

        # Edge masks — computed once, hoisted out of the layer loop.
        # `row % H` handles batch folding (several images stacked along rows).
        row_in_img = lax.broadcasted_iota(jnp.int32, (R, WC), 0) % H
        lane_id = lax.broadcasted_iota(jnp.int32, (R, WC), 1)
        top_edge = row_in_img == 0          # "row above" is outside the image
        bot_edge = row_in_img == H - 1      # "row below" is outside the image
        left_edge = lane_id < C             # "pixel to the left" is outside
        right_edge = lane_id >= WC - C      # "pixel to the right" is outside

        # Static unroll over layers (fine for shallow stacks; for L >> 4 use
        # lax.fori_loop with dynamic w1_ref[l]/w2_ref[l] indexing to bound
        # vreg live ranges).
        for l in range(L):
            a = jnp.maximum(cur, 0.0)                   # ReLU before 3x3 conv

            # dy shifts: sublane roll + edge mask (positive shifts only).
            up = jnp.where(top_edge, 0.0, pltpu.roll(a, shift=1, axis=0))
            down = jnp.where(bot_edge, 0.0, pltpu.roll(a, shift=R - 1, axis=0))

            # dx shifts: lane roll + edge mask; tap order t = 3*ky + kx.
            views = []
            for base in (up, a, down):                  # ky = 0, 1, 2
                lview = jnp.where(left_edge, 0.0,
                                  pltpu.roll(base, shift=C, axis=1))
                rview = jnp.where(right_edge, 0.0,
                                  pltpu.roll(base, shift=WC - C, axis=1))
                views += [lview, base, rview]           # kx = 0, 1, 2

            # One long-K matmul for the 3x3 conv (operand built in registers,
            # no scratch round-trip), ReLU, then the 1x1 conv + residual add,
            # all in the canonical lane-dense (R, 128-lane) layout.
            cat = jnp.concatenate(views, axis=-1)       # (R, 9*W*C)
            h = jnp.maximum(
                jnp.dot(cat, w1_ref[l], preferred_element_type=jnp.float32),
                0.0)                                    # (R, W*Crh)
            cur = cur + jnp.dot(h, w2_ref[l],
                                preferred_element_type=jnp.float32)

        o_ref[...] = jnp.maximum(cur, 0.0).astype(o_ref.dtype)  # final ReLU

    return kernel


def _padded_bytes(shape, itemsize=4):
    """Physical VMEM bytes with the last two dims padded to (8, 128)."""
    lead = 1
    for d in shape[:-2]:
        lead *= d
    sub = -(-shape[-2] // 8) * 8
    lane = -(-shape[-1] // 128) * 128
    return lead * sub * lane * itemsize


def residual_stack_forward(x_nchw, params, batch_per_block=1):
    """params: list of (w1 (3,3,Cin,Crh), w2 (Crh,Cout)) per residual layer.

    batch_per_block=1  -> grid=(B,), "parallel" (best on 2-TC v7x).
    batch_per_block=B  -> grid=(1,), whole batch folded into one slab
                          (best on 1-TC v5e/v6e; saves per-step overhead and
                          improves MXU M-occupancy).
    """
    B, C, H, W = x_nchw.shape
    L = len(params)
    Crh = params[0][0].shape[-1]
    WC = W * C
    WR = W * Crh
    assert B % batch_per_block == 0
    nblk = B // batch_per_block
    R = batch_per_block * H

    # Block-diagonal weight expansion (done once in the wrapper):
    #   w1big[t*W*C + x*C + c, x*Crh + r] = w1[ky, kx, c, r]   (t = 3*ky + kx)
    #   w2big[x*Crh + r,      x*C  + co] = w2[r, co]
    eye_w = jnp.eye(W, dtype=jnp.float32)
    w1big = jnp.stack([
        jnp.einsum('tcr,xz->txczr', w1.reshape(9, C, Crh), eye_w)
           .reshape(9 * WC, WR)
        for (w1, _) in params])                                 # (L, 9*WC, WR)
    w2big = jnp.stack([
        jnp.einsum('rc,xz->xrzc', w2, eye_w).reshape(WR, WC)
        for (_, w2) in params])                                 # (L, WR, WC)

    # NCHW -> lane-dense (nblk, R, W*C) slabs (layout plumbing in the wrapper).
    x_slab = jnp.transpose(x_nchw, (0, 2, 3, 1)).reshape(nblk, R, WC)

    # VMEM budget from the (8,128)-padded tile plan; cap at 48 MiB (v7x-safe).
    est = 2 * (_padded_bytes((R, WC)) + _padded_bytes((R, WC))
               + _padded_bytes(w1big.shape) + _padded_bytes(w2big.shape))
    vmem_limit = min(48 * 1024 * 1024, max(32 * 1024 * 1024, 2 * est))

    kernel = _make_stack_kernel(H, W, C, Crh, L, R)
    out = pl.pallas_call(
        kernel,
        out_shape=jax.ShapeDtypeStruct((nblk, R, WC), x_nchw.dtype),
        grid_spec=pltpu.PrefetchScalarGridSpec(
            num_scalar_prefetch=0,
            grid=(nblk,),
            in_specs=[
                pl.BlockSpec((pl.Squeezed(), R, WC), lambda b: (b, 0, 0)),
                pl.BlockSpec((L, 9 * WC, WR), lambda b: (0, 0, 0)),
                pl.BlockSpec((L, WR, WC), lambda b: (0, 0, 0)),
            ],
            out_specs=pl.BlockSpec((pl.Squeezed(), R, WC),
                                   lambda b: (b, 0, 0)),
        ),
        compiler_params=pltpu.CompilerParams(
            dimension_semantics=("parallel",),
            vmem_limit_bytes=vmem_limit,
        ),
    )(x_slab, w1big, w2big)

    return jnp.transpose(out.reshape(B, H, W, C), (0, 3, 1, 2))


def residual_stack_reference(x_nchw, params):
    """Pure-JAX reference (lax conv) mirroring the PyTorch forward."""
    x = x_nchw
    for w1, w2 in params:
        h = jax.nn.relu(x)
        h = jax.lax.conv_general_dilated(
            h, w1, window_strides=(1, 1), padding="SAME",
            dimension_numbers=("NCHW", "HWIO", "NCHW"))
        h = jax.nn.relu(h)
        w2_hwio = w2.reshape(1, 1, *w2.shape)
        h = jax.lax.conv_general_dilated(
            h, w2_hwio, window_strides=(1, 1), padding="SAME",
            dimension_numbers=("NCHW", "HWIO", "NCHW"))
        x = x + h
    return jax.nn.relu(x)


def init_params(key, in_channels, num_hiddens, num_residual_layers,
                num_residual_hiddens):
    # Residual add requires in_channels == num_hiddens (as in the VQ-VAE usage).
    assert in_channels == num_hiddens
    params = []
    for _ in range(num_residual_layers):
        k1, k2, key = jax.random.split(key, 3)
        w1 = jax.random.normal(
            k1, (3, 3, in_channels, num_residual_hiddens), jnp.float32)
        w1 = w1 * (2.0 / (9 * in_channels)) ** 0.5
        w2 = jax.random.normal(
            k2, (num_residual_hiddens, num_hiddens), jnp.float32)
        w2 = w2 * (2.0 / num_residual_hiddens) ** 0.5
        params.append((w1, w2))
    return params


if __name__ == "__main__":
    B, C, H, W = 2, 8, 16, 16          # W * C = 128 -> lane-dense slabs
    num_hiddens = C
    num_residual_layers = 2
    num_residual_hiddens = 4

    key = jax.random.PRNGKey(0)
    kx, kp = jax.random.split(key)
    x = jax.random.normal(kx, (B, C, H, W), jnp.float32)
    params = init_params(kp, C, num_hiddens, num_residual_layers,
                         num_residual_hiddens)

    out = residual_stack_forward(x, params)        # grid=(B,), v7x-friendly
    out = jax.block_until_ready(out)

    ref = residual_stack_reference(x, params)
    assert out.shape == (B, C, H, W)
    assert jnp.allclose(out, ref, atol=1e-4, rtol=1e-4), (
        float(jnp.max(jnp.abs(out - ref))))

    print("KERNEL_OK")
</pallas_src>

<mosaic_0001>
module attributes {stable_mosaic.version = 11 : i64} {
  func.func @kernel(%arg0: i32, %arg1: memref<1x16x128xf32, #tpu.memory_space<vmem>>, %arg2: memref<2x1152x64xf32, #tpu.memory_space<vmem>>, %arg3: memref<2x64x128xf32, #tpu.memory_space<vmem>>, %arg4: memref<1x16x128xf32, #tpu.memory_space<vmem>>) attributes {dimension_semantics = [#tpu.dimension_semantics<parallel>], iteration_bounds = array<i64: 2>, scalar_prefetch = 0 : i64, scratch_operands = 0 : i64, tpu.core_type = #tpu.core_type<tc>, window_params = [{transform_indices = @transform_0, window_bounds = array<i64: 1, 16, 128>}, {pipeline_mode = #tpu.pipeline_mode<synchronous>, transform_indices = @transform_1, window_bounds = array<i64: 2, 1152, 64>}, {pipeline_mode = #tpu.pipeline_mode<synchronous>, transform_indices = @transform_2, window_bounds = array<i64: 2, 64, 128>}, {transform_indices = @transform_3, window_bounds = array<i64: 1, 16, 128>}]} {
    %c0 = arith.constant 0 : index
    %c0_0 = arith.constant 0 : index
    %c0_1 = arith.constant 0 : index
    %0 = vector.load %arg1[%c0, %c0_0, %c0_1] : memref<1x16x128xf32, #tpu.memory_space<vmem>>, vector<1x16x128xf32>
    %1 = vector.shape_cast %0 : vector<1x16x128xf32> to vector<16x128xf32>
    %2 = tpu.iota {dimensions = array<i32: 0>} : vector<16x128xi32>
    %c16_i32 = arith.constant 16 : i32
    %c0_i32 = arith.constant 0 : i32
    %3 = arith.cmpi eq, %c16_i32, %c0_i32 : i32
    %c1_i32 = arith.constant 1 : i32
    %4 = arith.select %3, %c1_i32, %c16_i32 : i32
    %5 = vector.broadcast %4 : i32 to vector<16x128xi32>
    %6 = arith.remsi %2, %5 : vector<16x128xi32>
    %c0_i32_2 = arith.constant 0 : i32
    %7 = vector.broadcast %c0_i32_2 : i32 to vector<16x128xi32>
    %8 = arith.cmpi ne, %6, %7 : vector<16x128xi32>
    %c0_i32_3 = arith.constant 0 : i32
    %9 = vector.broadcast %c0_i32_3 : i32 to vector<16x128xi32>
    %10 = arith.cmpi slt, %6, %9 : vector<16x128xi32>
    %c0_i32_4 = arith.constant 0 : i32
    %11 = arith.cmpi slt, %4, %c0_i32_4 : i32
    %12 = vector.broadcast %11 : i1 to vector<16x128xi1>
    %13 = vector.broadcast %12 : vector<16x128xi1> to vector<16x128xi1>
    %14 = arith.xori %10, %13 : vector<16x128xi1>
    %15 = arith.andi %14, %8 : vector<16x128xi1>
    %16 = vector.broadcast %4 : i32 to vector<16x128xi32>
    %17 = arith.addi %6, %16 : vector<16x128xi32>
    %18 = arith.select %15, %17, %6 : vector<16x128xi1>, vector<16x128xi32>
    %19 = tpu.iota {dimensions = array<i32: 1>} : vector<16x128xi32>
    %c0_i32_5 = arith.constant 0 : i32
    %20 = vector.broadcast %c0_i32_5 : i32 to vector<16x128xi32>
    %21 = arith.cmpi eq, %18, %20 : vector<16x128xi32>
    %c15_i32 = arith.constant 15 : i32
    %22 = vector.broadcast %c15_i32 : i32 to vector<16x128xi32>
    %23 = arith.cmpi eq, %18, %22 : vector<16x128xi32>
    %c8_i32 = arith.constant 8 : i32
    %24 = vector.broadcast %c8_i32 : i32 to vector<16x128xi32>
    %25 = arith.cmpi slt, %19, %24 : vector<16x128xi32>
    %c120_i32 = arith.constant 120 : i32
    %26 = vector.broadcast %c120_i32 : i32 to vector<16x128xi32>
    %27 = arith.cmpi sge, %19, %26 : vector<16x128xi32>
    %cst = arith.constant 0.000000e+00 : f32
    %28 = vector.broadcast %cst : f32 to vector<16x128xf32>
    %29 = arith.maximumf %1, %28 : vector<16x128xf32>
    %c1_i32_6 = arith.constant 1 : i32
    %30 = tpu.dynamic_rotate %29 by %c1_i32_6 dim 0 : vector<16x128xf32>, i32 -> vector<16x128xf32>
    %cst_7 = arith.constant 0.000000e+00 : f32
    %31 = vector.broadcast %cst_7 : f32 to vector<16x128xf32>
    %32 = arith.select %21, %31, %30 : vector<16x128xi1>, vector<16x128xf32>
    %c15_i32_8 = arith.constant 15 : i32
    %33 = tpu.dynamic_rotate %29 by %c15_i32_8 dim 0 : vector<16x128xf32>, i32 -> vector<16x128xf32>
    %cst_9 = arith.constant 0.000000e+00 : f32
    %34 = vector.broadcast %cst_9 : f32 to vector<16x128xf32>
    %35 = arith.select %23, %34, %33 : vector<16x128xi1>, vector<16x128xf32>
    %c8_i32_10 = arith.constant 8 : i32
    %36 = tpu.dynamic_rotate %32 by %c8_i32_10 dim 1 : vector<16x128xf32>, i32 -> vector<16x128xf32>
    %cst_11 = arith.constant 0.000000e+00 : f32
    %37 = vector.broadcast %cst_11 : f32 to vector<16x128xf32>
    %38 = arith.select %25, %37, %36 : vector<16x128xi1>, vector<16x128xf32>
    %c120_i32_12 = arith.constant 120 : i32
    %39 = tpu.dynamic_rotate %32 by %c120_i32_12 dim 1 : vector<16x128xf32>, i32 -> vector<16x128xf32>
    %cst_13 = arith.constant 0.000000e+00 : f32
    %40 = vector.broadcast %cst_13 : f32 to vector<16x128xf32>
    %41 = arith.select %27, %40, %39 : vector<16x128xi1>, vector<16x128xf32>
    %c8_i32_14 = arith.constant 8 : i32
    %42 = tpu.dynamic_rotate %29 by %c8_i32_14 dim 1 : vector<16x128xf32>, i32 -> vector<16x128xf32>
    %cst_15 = arith.constant 0.000000e+00 : f32
    %43 = vector.broadcast %cst_15 : f32 to vector<16x128xf32>
    %44 = arith.select %25, %43, %42 : vector<16x128xi1>, vector<16x128xf32>
    %c120_i32_16 = arith.constant 120 : i32
    %45 = tpu.dynamic_rotate %29 by %c120_i32_16 dim 1 : vector<16x128xf32>, i32 -> vector<16x128xf32>
    %cst_17 = arith.constant 0.000000e+00 : f32
    %46 = vector.broadcast %cst_17 : f32 to vector<16x128xf32>
    %47 = arith.select %27, %46, %45 : vector<16x128xi1>, vector<16x128xf32>
    %c8_i32_18 = arith.constant 8 : i32
    %48 = tpu.dynamic_rotate %35 by %c8_i32_18 dim 1 : vector<16x128xf32>, i32 -> vector<16x128xf32>
    %cst_19 = arith.constant 0.000000e+00 : f32
    %49 = vector.broadcast %cst_19 : f32 to vector<16x128xf32>
    %50 = arith.select %25, %49, %48 : vector<16x128xi1>, vector<16x128xf32>
    %c120_i32_20 = arith.constant 120 : i32
    %51 = tpu.dynamic_rotate %35 by %c120_i32_20 dim 1 : vector<16x128xf32>, i32 -> vector<16x128xf32>
    %cst_21 = arith.constant 0.000000e+00 : f32
    %52 = vector.broadcast %cst_21 : f32 to vector<16x128xf32>
    %53 = arith.select %27, %52, %51 : vector<16x128xi1>, vector<16x128xf32>
    %54 = tpu.concatenate %38, %32, %41, %44, %29, %47, %50, %35, %53 in 1 : vector<16x128xf32>, vector<16x128xf32>, vector<16x128xf32>, vector<16x128xf32>, vector<16x128xf32>, vector<16x128xf32>, vector<16x128xf32>, vector<16x128xf32>, vector<16x128xf32> -> vector<16x1152xf32>
    %c0_22 = arith.constant 0 : index
    %c0_23 = arith.constant 0 : index
    %c0_24 = arith.constant 0 : index
    %55 = vector.load %arg2[%c0_22, %c0_23, %c0_24] : memref<2x1152x64xf32, #tpu.memory_space<vmem>>, vector<1x1152x64xf32>
    %56 = vector.shape_cast %55 : vector<1x1152x64xf32> to vector<1152x64xf32>
    %cst_25 = arith.constant dense<0.000000e+00> : vector<16x64xf32>
    %57 = tpu.matmul %54, %56, %cst_25 {dimension_numbers = #tpu.dot_dimension_numbers<[1], [0], [0], [1], [0, 0, 1, 1], [], []>} : vector<16x1152xf32>, vector<1152x64xf32>, vector<16x64xf32> -> vector<16x64xf32>
    %cst_26 = arith.constant 0.000000e+00 : f32
    %58 = vector.broadcast %cst_26 : f32 to vector<16x64xf32>
    %59 = arith.maximumf %57, %58 : vector<16x64xf32>
    %c0_27 = arith.constant 0 : index
    %c0_28 = arith.constant 0 : index
    %c0_29 = arith.constant 0 : index
    %60 = vector.load %arg3[%c0_27, %c0_28, %c0_29] : memref<2x64x128xf32, #tpu.memory_space<vmem>>, vector<1x64x128xf32>
    %61 = vector.shape_cast %60 : vector<1x64x128xf32> to vector<64x128xf32>
    %cst_30 = arith.constant dense<0.000000e+00> : vector<16x128xf32>
    %62 = tpu.matmul %59, %61, %cst_30 {dimension_numbers = #tpu.dot_dimension_numbers<[1], [0], [0], [1], [0, 0, 1, 1], [], []>} : vector<16x64xf32>, vector<64x128xf32>, vector<16x128xf32> -> vector<16x128xf32>
    %63 = arith.addf %1, %62 : vector<16x128xf32>
    %cst_31 = arith.constant 0.000000e+00 : f32
    %64 = vector.broadcast %cst_31 : f32 to vector<16x128xf32>
    %65 = arith.maximumf %63, %64 : vector<16x128xf32>
    %c1_i32_32 = arith.constant 1 : i32
    %66 = tpu.dynamic_rotate %65 by %c1_i32_32 dim 0 : vector<16x128xf32>, i32 -> vector<16x128xf32>
    %cst_33 = arith.constant 0.000000e+00 : f32
    %67 = vector.broadcast %cst_33 : f32 to vector<16x128xf32>
    %68 = arith.select %21, %67, %66 : vector<16x128xi1>, vector<16x128xf32>
    %c15_i32_34 = arith.constant 15 : i32
    %69 = tpu.dynamic_rotate %65 by %c15_i32_34 dim 0 : vector<16x128xf32>, i32 -> vector<16x128xf32>
    %cst_35 = arith.constant 0.000000e+00 : f32
    %70 = vector.broadcast %cst_35 : f32 to vector<16x128xf32>
    %71 = arith.select %23, %70, %69 : vector<16x128xi1>, vector<16x128xf32>
    %c8_i32_36 = arith.constant 8 : i32
    %72 = tpu.dynamic_rotate %68 by %c8_i32_36 dim 1 : vector<16x128xf32>, i32 -> vector<16x128xf32>
    %cst_37 = arith.constant 0.000000e+00 : f32
    %73 = vector.broadcast %cst_37 : f32 to vector<16x128xf32>
    %74 = arith.select %25, %73, %72 : vector<16x128xi1>, vector<16x128xf32>
    %c120_i32_38 = arith.constant 120 : i32
    %75 = tpu.dynamic_rotate %68 by %c120_i32_38 dim 1 : vector<16x128xf32>, i32 -> vector<16x128xf32>
    %cst_39 = arith.constant 0.000000e+00 : f32
    %76 = vector.broadcast %cst_39 : f32 to vector<16x128xf32>
    %77 = arith.select %27, %76, %75 : vector<16x128xi1>, vector<16x128xf32>
    %c8_i32_40 = arith.constant 8 : i32
    %78 = tpu.dynamic_rotate %65 by %c8_i32_40 dim 1 : vector<16x128xf32>, i32 -> vector<16x128xf32>
    %cst_41 = arith.constant 0.000000e+00 : f32
    %79 = vector.broadcast %cst_41 : f32 to vector<16x128xf32>
    %80 = arith.select %25, %79, %78 : vector<16x128xi1>, vector<16x128xf32>
    %c120_i32_42 = arith.constant 120 : i32
    %81 = tpu.dynamic_rotate %65 by %c120_i32_42 dim 1 : vector<16x128xf32>, i32 -> vector<16x128xf32>
    %cst_43 = arith.constant 0.000000e+00 : f32
    %82 = vector.broadcast %cst_43 : f32 to vector<16x128xf32>
    %83 = arith.select %27, %82, %81 : vector<16x128xi1>, vector<16x128xf32>
    %c8_i32_44 = arith.constant 8 : i32
    %84 = tpu.dynamic_rotate %71 by %c8_i32_44 dim 1 : vector<16x128xf32>, i32 -> vector<16x128xf32>
    %cst_45 = arith.constant 0.000000e+00 : f32
    %85 = vector.broadcast %cst_45 : f32 to vector<16x128xf32>
    %86 = arith.select %25, %85, %84 : vector<16x128xi1>, vector<16x128xf32>
    %c120_i32_46 = arith.constant 120 : i32
    %87 = tpu.dynamic_rotate %71 by %c120_i32_46 dim 1 : vector<16x128xf32>, i32 -> vector<16x128xf32>
    %cst_47 = arith.constant 0.000000e+00 : f32
    %88 = vector.broadcast %cst_47 : f32 to vector<16x128xf32>
    %89 = arith.select %27, %88, %87 : vector<16x128xi1>, vector<16x128xf32>
    %90 = tpu.concatenate %74, %68, %77, %80, %65, %83, %86, %71, %89 in 1 : vector<16x128xf32>, vector<16x128xf32>, vector<16x128xf32>, vector<16x128xf32>, vector<16x128xf32>, vector<16x128xf32>, vector<16x128xf32>, vector<16x128xf32>, vector<16x128xf32> -> vector<16x1152xf32>
    %c1 = arith.constant 1 : index
    %c0_48 = arith.constant 0 : index
    %c0_49 = arith.constant 0 : index
    %91 = vector.load %arg2[%c1, %c0_48, %c0_49] : memref<2x1152x64xf32, #tpu.memory_space<vmem>>, vector<1x1152x64xf32>
    %92 = vector.shape_cast %91 : vector<1x1152x64xf32> to vector<1152x64xf32>
    %cst_50 = arith.constant dense<0.000000e+00> : vector<16x64xf32>
    %93 = tpu.matmul %90, %92, %cst_50 {dimension_numbers = #tpu.dot_dimension_numbers<[1], [0], [0], [1], [0, 0, 1, 1], [], []>} : vector<16x1152xf32>, vector<1152x64xf32>, vector<16x64xf32> -> vector<16x64xf32>
    %cst_51 = arith.constant 0.000000e+00 : f32
    %94 = vector.broadcast %cst_51 : f32 to vector<16x64xf32>
    %95 = arith.maximumf %93, %94 : vector<16x64xf32>
    %c1_52 = arith.constant 1 : index
    %c0_53 = arith.constant 0 : index
    %c0_54 = arith.constant 0 : index
    %96 = vector.load %arg3[%c1_52, %c0_53, %c0_54] : memref<2x64x128xf32, #tpu.memory_space<vmem>>, vector<1x64x128xf32>
    %97 = vector.shape_cast %96 : vector<1x64x128xf32> to vector<64x128xf32>
    %cst_55 = arith.constant dense<0.000000e+00> : vector<16x128xf32>
    %98 = tpu.matmul %95, %97, %cst_55 {dimension_numbers = #tpu.dot_dimension_numbers<[1], [0], [0], [1], [0, 0, 1, 1], [], []>} : vector<16x64xf32>, vector<64x128xf32>, vector<16x128xf32> -> vector<16x128xf32>
    %99 = arith.addf %63, %98 : vector<16x128xf32>
    %cst_56 = arith.constant 0.000000e+00 : f32
    %100 = vector.broadcast %cst_56 : f32 to vector<16x128xf32>
    %101 = arith.maximumf %99, %100 : vector<16x128xf32>
    %c0_57 = arith.constant 0 : index
    %c0_58 = arith.constant 0 : index
    %c0_59 = arith.constant 0 : index
    %102 = vector.load %arg4[%c0_57, %c0_58, %c0_59] : memref<1x16x128xf32, #tpu.memory_space<vmem>>, vector<1x16x128xf32>
    %103 = vector.shape_cast %102 : vector<1x16x128xf32> to vector<16x128xf32>
    %104 = vector.shape_cast %101 : vector<16x128xf32> to vector<1x16x128xf32>
    tpu.vector_store %arg4[%c0_57, %c0_58, %c0_59], %104 {strides = array<i32>} : memref<1x16x128xf32, #tpu.memory_space<vmem>>, vector<1x16x128xf32>,
    return
  }
  func.func @transform_0(%arg0: i32) -> (i32, i32, i32) {
    %c0_i32 = arith.constant 0 : i32
    %c0_i32_0 = arith.constant 0 : i32
    %c0_i32_1 = arith.constant 0 : i32
    return %arg0, %c0_i32, %c0_i32_0 : i32, i32, i32
  }
  func.func @transform_1(%arg0: i32) -> (i32, i32, i32) {
    %c0_i32 = arith.constant 0 : i32
    %c0_i32_0 = arith.constant 0 : i32
    %c0_i32_1 = arith.constant 0 : i32
    %c0_i32_2 = arith.constant 0 : i32
    return %c0_i32, %c0_i32_0, %c0_i32_1 : i32, i32, i32
  }
  func.func @transform_2(%arg0: i32) -> (i32, i32, i32) {
    %c0_i32 = arith.constant 0 : i32
    %c0_i32_0 = arith.constant 0 : i32
    %c0_i32_1 = arith.constant 0 : i32
    %c0_i32_2 = arith.constant 0 : i32
    return %c0_i32, %c0_i32_0, %c0_i32_1 : i32, i32, i32
  }
  func.func @transform_3(%arg0: i32) -> (i32, i32, i32) {
    %c0_i32 = arith.constant 0 : i32
    %c0_i32_0 = arith.constant 0 : i32
    %c0_i32_1 = arith.constant 0 : i32
    return %arg0, %c0_i32, %c0_i32_0 : i32, i32, i32
  }
}

</mosaic_0001>

<llo_original>
// kernel: tpu_custom_call.1
$region0: #{tpu_custom_call.1}
  #allocation0 [shape = 'u32[]', space=smem, size = 0x4, offset = 0x4, fixed_abs, tag = 'smem constant byte address 0x4 - core index']
  #allocation1 [shape = 'u32[144,128]{1,0:T(1,128)}', space=vmem, size = 0x12000, scoped, tag = 'internal scratch']
  %s0 = inlined_call_operand.vmem [shape: f32[2,16,128], index: 0, kind: input, shape index: {}]
  %s1 = inlined_call_operand.vmem [shape: f32[2,1152,64], index: 1, kind: input, shape index: {}]
  %s2 = inlined_call_operand.vmem [shape: f32[2,64,128], index: 2, kind: input, shape index: {}]
  %s3 = inlined_call_operand.hbm [shape: f32[2,16,128], index: 3, kind: output, shape index: {}]
  %s4 = sld [smem:[#allocation0]]
  $region45: #{tpu_custom_call.1} parent=0
    _
  %s6 = ssub.s32 1, %s4
  %s7 = scalar_select 0, %s6, %s4
  $region1: #{tpu_custom_call.1} parent=0
    #allocation2 [shape = 'u8[16384]{0}', space=vmem, size = 0x4000, scoped, tag = 'output window, operand 0']
    #allocation3 [shape = 's32[2]{0}', space=sflag, size = 0x8, scoped, tag = 'scoped memory for tpu_custom_call.1']
    %8 = vsyncpa [#allocation3], 0
    %s9 = scalar_lea.sflag [#allocation3], 1
    %10 = vsyncpa %s9, 0
    loop: start=0, step=1, limit=4
    $region2: #{tpu_custom_call.1} parent=1 // loop_pre_header
      _
    $region3: #{tpu_custom_call.1} parent=1 // loop_header
      %s12 = sphi 0, %s16
      %p13 = scmp.ge.s32.totalorder %s12, 4
      %s22 = sphi 0, %s24
      %s25 = sphi 0, %s22
      %s26 = sphi 0, %s25
      %s42 = sphi 0, %s26
      %s46 = sphi 0, %s46
      %s48 = sphi 0, %s46
      %s49 = sphi 0, %s48
      %s63 = sphi 0, %s49
      %s67 = sphi 0, %s67
      %s69 = sphi 0, %s67
      %s70 = sphi 0, %s69
      %s84 = sphi 0, %s70
      %s90 = sphi 0, %s92
      %s93 = sphi 0, %s90
      %s94 = sphi 0, %s93
      %s110 = sphi 0, %s94
    $region4: #{tpu_custom_call.1} parent=1 // loop_header_branch
      %15 = sbr.rel (%p13) target = $region8
    $region5: #{tpu_custom_call.1} parent=1 // loop_body
      %s17 = ssub.s32 %s12, 1
      %s18 = ssub.s32 %s12, 2
      %s19 = sadd.s32 %s12, 1
      %s20 = ssub.s32 %s12, %s19
      %p21 = scmp.eq.s32.totalorder %s20, 0
      %s23 = sadd.s32 %s22, 1
      %s24 = scalar_select %p21, %s22, %s23
      %p27 = pneg %p21
      %p28 = scmp.eq.s32.totalorder %s12, 1
      %p29 = por %p27, %p28
      %p30 = scmp.ne.s32.totalorder %s22, %s25
      %p31 = scmp.eq.s32.totalorder %s12, 0
      %p32 = por %p30, %p31
      %p33 = scmp.ne.s32.totalorder %s22, %s25
      %p34 = scmp.eq.s32.totalorder %s17, 1
      %p35 = por %p33, %p34
      %p36 = scmp.ne.s32.totalorder %s25, %s26
      %p37 = scmp.eq.s32.totalorder %s17, 0
      %p38 = por %p36, %p37
      %p39 = scmp.ne.s32.totalorder %s25, %s26
      %p40 = scmp.eq.s32.totalorder %s18, 1
      %p41 = por %p39, %p40
      %p43 = scmp.ne.s32.totalorder %s26, %s42
      %p44 = scmp.eq.s32.totalorder %s18, 0
      %p45 = por %p43, %p44
      %s47 = sadd.s32 %s46, 1
      %p50 = scmp.eq.s32.totalorder %s12, 1
      %p51 = scmp.ne.s32.totalorder %s46, %s48
      %p52 = scmp.eq.s32.totalorder %s12, 0
      %p53 = por %p51, %p52
      %p54 = scmp.ne.s32.totalorder %s46, %s48
      %p55 = scmp.eq.s32.totalorder %s17, 1
      %p56 = por %p54, %p55
      %p57 = scmp.ne.s32.totalorder %s48, %s49
      %p58 = scmp.eq.s32.totalorder %s17, 0
      %p59 = por %p57, %p58
      %p60 = scmp.ne.s32.totalorder %s48, %s49
      %p61 = scmp.eq.s32.totalorder %s18, 1
      %p62 = por %p60, %p61
      %p64 = scmp.ne.s32.totalorder %s49, %s63
      %p65 = scmp.eq.s32.totalorder %s18, 0
      %p66 = por %p64, %p65
      %s68 = sadd.s32 %s67, 1
      %p71 = scmp.eq.s32.totalorder %s12, 1
      %p72 = scmp.ne.s32.totalorder %s67, %s69
      %p73 = scmp.eq.s32.totalorder %s12, 0
      %p74 = por %p72, %p73
      %p75 = scmp.ne.s32.totalorder %s67, %s69
      %p76 = scmp.eq.s32.totalorder %s17, 1
      %p77 = por %p75, %p76
      %p78 = scmp.ne.s32.totalorder %s69, %s70
      %p79 = scmp.eq.s32.totalorder %s17, 0
      %p80 = por %p78, %p79
      %p81 = scmp.ne.s32.totalorder %s69, %s70
      %p82 = scmp.eq.s32.totalorder %s18, 1
      %p83 = por %p81, %p82
      %p85 = scmp.ne.s32.totalorder %s70, %s84
      %p86 = scmp.eq.s32.totalorder %s18, 0
      %p87 = por %p85, %p86
      %s88 = ssub.s32 %s12, %s19
      %p89 = scmp.eq.s32.totalorder %s88, 0
      %s91 = sadd.s32 %s90, 1
      %s92 = scalar_select %p89, %s90, %s91
      %p95 = pneg %p89
      %p96 = scmp.eq.s32.totalorder %s12, 1
      %p97 = por %p95, %p96
      %p98 = scmp.ne.s32.totalorder %s90, %s93
      %p99 = scmp.eq.s32.totalorder %s12, 0
      %p100 = por %p98, %p99
      %p101 = scmp.ne.s32.totalorder %s90, %s93
      %p102 = scmp.eq.s32.totalorder %s17, 1
      %p103 = por %p101, %p102
      %p104 = scmp.ne.s32.totalorder %s93, %s94
      %p105 = scmp.eq.s32.totalorder %s17, 0
      %p106 = por %p104, %p105
      %p107 = scmp.ne.s32.totalorder %s93, %s94
      %p108 = scmp.eq.s32.totalorder %s18, 1
      %p109 = por %p107, %p108
      %p111 = scmp.ne.s32.totalorder %s94, %s110
      %p112 = scmp.eq.s32.totalorder %s18, 0
      %p113 = por %p111, %p112
      %p114 = scmp.le.s32.totalorder 1, %s12
      %p115 = scmp.lt.s32.totalorder %s12, 3
      %p116 = pnand %p114, %p115
      %p117 = pneg %p116
      // Predicated region
      $region9: #{tpu_custom_call.1} parent=5 // pred_check
        _
      $region10: #{tpu_custom_call.1} parent=5 // pred_check_branch
        %119 = sbr.rel (%p116) target = $region12
      $region11: #{tpu_custom_call.1} parent=5 // pred_region
        %s120 = ssub.s32 %s12, 1
        // Predicated region
        $region13: #{tpu_custom_call.1} parent=11 // pred_check
          %p121 = pneg %p59
        $region14: #{tpu_custom_call.1} parent=11 // pred_check_branch
          %123 = sbr.rel (%p121) target = $region16
        $region15: #{tpu_custom_call.1} parent=11 // pred_region
          _
        $region16: #{tpu_custom_call.1} parent=11 // pred_fallthru
          _
        // Predicated region
        $region17: #{tpu_custom_call.1} parent=11 // pred_check
          %p124 = pneg %p80
        $region18: #{tpu_custom_call.1} parent=11 // pred_check_branch
          %126 = sbr.rel (%p124) target = $region20
        $region19: #{tpu_custom_call.1} parent=11 // pred_region
          _
        $region20: #{tpu_custom_call.1} parent=11 // pred_fallthru
          _
      $region12: #{tpu_custom_call.1} parent=5 // pred_fallthru
        _
      %p127 = scmp.lt.s32.totalorder %s12, 2
      // Predicated region
      $region21: #{tpu_custom_call.1} parent=5 // pred_check
        %p128 = pneg %p127
      $region22: #{tpu_custom_call.1} parent=5 // pred_check_branch
        %130 = sbr.rel (%p128) target = $region24
      $region23: #{tpu_custom_call.1} parent=5 // pred_region
        // Predicated region
        $region25: #{tpu_custom_call.1} parent=23 // pred_check
          %p131 = pneg %p32
        $region26: #{tpu_custom_call.1} parent=23 // pred_check_branch
          %133 = sbr.rel (%p131) target = $region28
        $region27: #{tpu_custom_call.1} parent=23 // pred_region
          %p134 = scmp.lt.s32.totalorder %s12, 1
          %s135 = scalar_select %p134, %s12, 1
          %s136 = smul.addr %s135, 2
          %s137 = smul.addr %s136, 8
          %s138 = scalar_lea.vmem %s0, %s137
        $region28: #{tpu_custom_call.1} parent=23 // pred_fallthru
          _
      $region24: #{tpu_custom_call.1} parent=5 // pred_fallthru
        _
      %p139 = scmp.le.s32.totalorder 1, %s12
      %p140 = scmp.lt.s32.totalorder %s12, 3
      %p141 = pnand %p139, %p140
      %p142 = pneg %p141
      // Predicated region
      $region29: #{tpu_custom_call.1} parent=5 // pred_check
        _
      $region30: #{tpu_custom_call.1} parent=5 // pred_check_branch
        %144 = sbr.rel (%p141) target = $region32
      $region31: #{tpu_custom_call.1} parent=5 // pred_region
        %s145 = ssub.s32 %s12, 1
        %p146 = scmp.lt.s32.totalorder %s17, 1
        %s147 = scalar_select %p146, %s17, 1
        %s148 = smul.addr %s147, 2
        %s149 = smul.addr %s148, 8
        %s150 = scalar_lea.vmem %s0, %s149
        %p151 = pneg %p38
        %p152 = pneg %p35
        %p153 = pneg %p59
        %p154 = pneg %p56
        %p155 = pneg %p80
        %p156 = pneg %p77
        %p157 = pneg %p106
        %p158 = pneg %p103
        %s159 = sand.u32 %s93, 1
        %s160 = scalar_lea.sflag [#allocation3], %s159
        %s161 = sand.u32 %s93, 1
        %s162 = smul.addr %s161, 16
        %s163 = scalar_lea.vmem [#allocation2], %s162
        %p164 = scmp.lt.s32.totalorder %s17, 1
        %s165 = scalar_select %p164, %s17, 1
        %s166 = smul.addr %s165, 2
        %s167 = smul.addr %s166, 8
        %s168 = scalar_lea.vmem %s0, %s167
        %v169 = vld [vmem:[%s168] sm:$0xff]
        %v170 = vld [vmem:[%s168 + $0x8] sm:$0xff]
        %v171 = vlaneseq
        %v172 = vshrl.u32 %v171, 7
        %v173 = vadd.s32 %v172, 8
        %vm174 = vcmp.lt.s32.totalorder %v172, 0
        %v175 = vsub.s32 0, %v172
        %v176 = vsel %vm174, %v175, %v172
        %v177 = vshrl.u32 %v176, 4
        %v178 = vand.u32 %v176, 15
        %v179 = vsub.s32 0, %v178
        %v180 = vsel %vm174, %v179, %v178
        %vm181 = vcmp.lt.s32.totalorder %v173, 0
        %v182 = vsub.s32 0, %v173
        %v183 = vsel %vm181, %v182, %v173
        %v184 = vshrl.u32 %v183, 4
        %v185 = vand.u32 %v183, 15
        %v186 = vsub.s32 0, %v185
        %v187 = vsel %vm181, %v186, %v185
        %vm188 = vcmp.ne.s32.totalorder %v180, 0
        %vm189 = vcmp.ne.s32.totalorder %v187, 0
        %vm190 = vcmp.lt.s32.totalorder %v180, 0
        %vm191 = vcmp.lt.s32.totalorder %v187, 0
        %vm192 = vmand %vm190, %vm188
        %vm193 = vmand %vm191, %vm189
        %v194 = vadd.s32 %v180, 16
        %v195 = vadd.s32 %v187, 16
        %v196 = vsel %vm192, %v194, %v180
        %v197 = vsel %vm193, %v195, %v187
        %v198 = vlaneseq
        %v199 = vand.u32 %v198, 127
        %vm200 = vcmp.eq.s32.totalorder %v196, 0
        %vm201 = vcmp.eq.s32.totalorder %v197, 0
        %vm202 = vcmp.eq.s32.totalorder %v196, 15
        %vm203 = vcmp.eq.s32.totalorder %v197, 15
        %vm204 = vcmp.lt.s32.totalorder %v199, 8
        %vm205 = vcmp.ge.s32.totalorder %v199, 120
        %v206 = vmax.f32 %v169, 0.0
        %v207 = vmax.f32 %v170, 0.0
        %v208 = vrot.slane %v206, 7
        %v209 = vrot.slane %v207, 7
        %vm210 = vcmp.lt.s32.totalorder %v172, 1
        %v211 = vsel %vm210, %v208, %v209
        %v212 = vsel %vm210, %v209, %v208
        %v213 = vsel %vm200, 0.0, %v212
        %v214 = vsel %vm201, 0.0, %v211
        %v215 = vrot.slane %v206, 1
        %v216 = vrot.slane %v207, 1
        %vm217 = vcmp.lt.s32.totalorder %v172, 7
        %v218 = vsel %vm217, %v215, %v216
        %v219 = vsel %vm217, %v216, %v215
        %v220 = vsel %vm202, 0.0, %v218
        %v221 = vsel %vm203, 0.0, %v219
        %222 = vrot.lane.b32.xlu0 %v213, 8
        %v223 = vpop.permute.xlu0 %222
        %224 = vrot.lane.b32.xlu0 %v214, 8
        %v225 = vpop.permute.xlu0 %224
        %v226 = vsel %vm204, 0.0, %v223
        %v227 = vsel %vm204, 0.0, %v225
        %228 = vrot.lane.b32.xlu0 %v213, 120
        %v229 = vpop.permute.xlu0 %228
        %230 = vrot.lane.b32.xlu0 %v214, 120
        %v231 = vpop.permute.xlu0 %230
        %v232 = vsel %vm205, 0.0, %v229
        %v233 = vsel %vm205, 0.0, %v231
        %234 = vrot.lane.b32.xlu0 %v206, 8
        %v235 = vpop.permute.xlu0 %234
        %236 = vrot.lane.b32.xlu0 %v207, 8
        %v237 = vpop.permute.xlu0 %236
        %v238 = vsel %vm204, 0.0, %v235
        %v239 = vsel %vm204, 0.0, %v237
        %240 = vrot.lane.b32.xlu0 %v206, 120
        %v241 = vpop.permute.xlu0 %240
        %242 = vrot.lane.b32.xlu0 %v207, 120
        %v243 = vpop.permute.xlu0 %242
        %v244 = vsel %vm205, 0.0, %v241
        %v245 = vsel %vm205, 0.0, %v243
        %246 = vrot.lane.b32.xlu0 %v220, 8
        %v247 = vpop.permute.xlu0 %246
        %248 = vrot.lane.b32.xlu0 %v221, 8
        %v249 = vpop.permute.xlu0 %248
        %v250 = vsel %vm204, 0.0, %v247
        %v251 = vsel %vm204, 0.0, %v249
        %252 = vrot.lane.b32.xlu0 %v220, 120
        %v253 = vpop.permute.xlu0 %252
        %254 = vrot.lane.b32.xlu0 %v221, 120
        %v255 = vpop.permute.xlu0 %254
        %v256 = vsel %vm205, 0.0, %v253
        %v257 = vsel %vm205, 0.0, %v255
        %v258 = vld [vmem:[%s1] sm:$0xff]
        %v259 = vld [vmem:[%s1 + $0x8] sm:$0xff]
        %v260 = vld [vmem:[%s1 + $0x10] sm:$0xff]
        %v261 = vld [vmem:[%s1 + $0x18] sm:$0xff]
        %v262 = vld [vmem:[%s1 + $0x20] sm:$0xff]
        %v263 = vld [vmem:[%s1 + $0x28] sm:$0xff]
        %v264 = vld [vmem:[%s1 + $0x30] sm:$0xff]
        %v265 = vld [vmem:[%s1 + $0x38] sm:$0xff]
        %v266 = vld [vmem:[%s1 + $0x40] sm:$0xff]
        %v267 = vld [vmem:[%s1 + $0x48] sm:$0xff]
        %v268 = vld [vmem:[%s1 + $0x50] sm:$0xff]
        %v269 = vld [vmem:[%s1 + $0x58] sm:$0xff]
        %v270 = vld [vmem:[%s1 + $0x60] sm:$0xff]
        %v271 = vld [vmem:[%s1 + $0x68] sm:$0xff]
        %v272 = vld [vmem:[%s1 + $0x70] sm:$0xff]
        %v273 = vld [vmem:[%s1 + $0x78] sm:$0xff]
        %v274 = vld [vmem:[%s1 + $0x80] sm:$0xff]
        %v275 = vld [vmem:[%s1 + $0x88] sm:$0xff]
        %v276 = vld [vmem:[%s1 + $0x90] sm:$0xff]
        %v277 = vld [vmem:[%s1 + $0x98] sm:$0xff]
        %v278 = vld [vmem:[%s1 + $0xa0] sm:$0xff]
        %v279 = vld [vmem:[%s1 + $0xa8] sm:$0xff]
        %v280 = vld [vmem:[%s1 + $0xb0] sm:$0xff]
        %v281 = vld [vmem:[%s1 + $0xb8] sm:$0xff]
        %v282 = vld [vmem:[%s1 + $0xc0] sm:$0xff]
        %v283 = vld [vmem:[%s1 + $0xc8] sm:$0xff]
        %v284 = vld [vmem:[%s1 + $0xd0] sm:$0xff]
        %v285 = vld [vmem:[%s1 + $0xd8] sm:$0xff]
        %v286 = vld [vmem:[%s1 + $0xe0] sm:$0xff]
        %v287 = vld [vmem:[%s1 + $0xe8] sm:$0xff]
        %v288 = vld [vmem:[%s1 + $0xf0] sm:$0xff]
        %v289 = vld [vmem:[%s1 + $0xf8] sm:$0xff]
        %v290 = vld [vmem:[%s1 + $0x100] sm:$0xff]
        %v291 = vld [vmem:[%s1 + $0x108] sm:$0xff]
        %v292 = vld [vmem:[%s1 + $0x110] sm:$0xff]
        %v293 = vld [vmem:[%s1 + $0x118] sm:$0xff]
        %v294 = vld [vmem:[%s1 + $0x120] sm:$0xff]
        %v295 = vld [vmem:[%s1 + $0x128] sm:$0xff]
        %v296 = vld [vmem:[%s1 + $0x130] sm:$0xff]
        %v297 = vld [vmem:[%s1 + $0x138] sm:$0xff]
        %v298 = vld [vmem:[%s1 + $0x140] sm:$0xff]
        %v299 = vld [vmem:[%s1 + $0x148] sm:$0xff]
        %v300 = vld [vmem:[%s1 + $0x150] sm:$0xff]
        %v301 = vld [vmem:[%s1 + $0x158] sm:$0xff]
        %v302 = vld [vmem:[%s1 + $0x160] sm:$0xff]
        %v303 = vld [vmem:[%s1 + $0x168] sm:$0xff]
        %v304 = vld [vmem:[%s1 + $0x170] sm:$0xff]
        %v305 = vld [vmem:[%s1 + $0x178] sm:$0xff]
        %v306 = vld [vmem:[%s1 + $0x180] sm:$0xff]
        %v307 = vld [vmem:[%s1 + $0x188] sm:$0xff]
        %v308 = vld [vmem:[%s1 + $0x190] sm:$0xff]
        %v309 = vld [vmem:[%s1 + $0x198] sm:$0xff]
        %v310 = vld [vmem:[%s1 + $0x1a0] sm:$0xff]
        %v311 = vld [vmem:[%s1 + $0x1a8] sm:$0xff]
        %v312 = vld [vmem:[%s1 + $0x1b0] sm:$0xff]
        %v313 = vld [vmem:[%s1 + $0x1b8] sm:$0xff]
        %v314 = vld [vmem:[%s1 + $0x1c0] sm:$0xff]
        %v315 = vld [vmem:[%s1 + $0x1c8] sm:$0xff]
        %v316 = vld [vmem:[%s1 + $0x1d0] sm:$0xff]
        %v317 = vld [vmem:[%s1 + $0x1d8] sm:$0xff]
        %v318 = vld [vmem:[%s1 + $0x1e0] sm:$0xff]
        %v319 = vld [vmem:[%s1 + $0x1e8] sm:$0xff]
        %v320 = vld [vmem:[%s1 + $0x1f0] sm:$0xff]
        %v321 = vld [vmem:[%s1 + $0x1f8] sm:$0xff]
        %v322 = vld [vmem:[%s1 + $0x200] sm:$0xff]
        %v323 = vld [vmem:[%s1 + $0x208] sm:$0xff]
        %v324 = vld [vmem:[%s1 + $0x210] sm:$0xff]
        %v325 = vld [vmem:[%s1 + $0x218] sm:$0xff]
        %v326 = vld [vmem:[%s1 + $0x220] sm:$0xff]
        %v327 = vld [vmem:[%s1 + $0x228] sm:$0xff]
        %v328 = vld [vmem:[%s1 + $0x230] sm:$0xff]
        %v329 = vld [vmem:[%s1 + $0x238] sm:$0xff]
        %v330 = vld [vmem:[%s1 + $0x240] sm:$0xff]
        %v331 = vld [vmem:[%s1 + $0x248] sm:$0xff]
        %v332 = vld [vmem:[%s1 + $0x250] sm:$0xff]
        %v333 = vld [vmem:[%s1 + $0x258] sm:$0xff]
        %v334 = vld [vmem:[%s1 + $0x260] sm:$0xff]
        %v335 = vld [vmem:[%s1 + $0x268] sm:$0xff]
        %v336 = vld [vmem:[%s1 + $0x270] sm:$0xff]
        %v337 = vld [vmem:[%s1 + $0x278] sm:$0xff]
        %v338 = vld [vmem:[%s1 + $0x280] sm:$0xff]
        %v339 = vld [vmem:[%s1 + $0x288] sm:$0xff]
        %v340 = vld [vmem:[%s1 + $0x290] sm:$0xff]
        %v341 = vld [vmem:[%s1 + $0x298] sm:$0xff]
        %v342 = vld [vmem:[%s1 + $0x2a0] sm:$0xff]
        %v343 = vld [vmem:[%s1 + $0x2a8] sm:$0xff]
        %v344 = vld [vmem:[%s1 + $0x2b0] sm:$0xff]
        %v345 = vld [vmem:[%s1 + $0x2b8] sm:$0xff]
        %v346 = vld [vmem:[%s1 + $0x2c0] sm:$0xff]
        %v347 = vld [vmem:[%s1 + $0x2c8] sm:$0xff]
        %v348 = vld [vmem:[%s1 + $0x2d0] sm:$0xff]
        %v349 = vld [vmem:[%s1 + $0x2d8] sm:$0xff]
        %v350 = vld [vmem:[%s1 + $0x2e0] sm:$0xff]
        %v351 = vld [vmem:[%s1 + $0x2e8] sm:$0xff]
        %v352 = vld [vmem:[%s1 + $0x2f0] sm:$0xff]
        %v353 = vld [vmem:[%s1 + $0x2f8] sm:$0xff]
        %v354 = vld [vmem:[%s1 + $0x300] sm:$0xff]
        %v355 = vld [vmem:[%s1 + $0x308] sm:$0xff]
        %v356 = vld [vmem:[%s1 + $0x310] sm:$0xff]
        %v357 = vld [vmem:[%s1 + $0x318] sm:$0xff]
        %v358 = vld [vmem:[%s1 + $0x320] sm:$0xff]
        %v359 = vld [vmem:[%s1 + $0x328] sm:$0xff]
        %v360 = vld [vmem:[%s1 + $0x330] sm:$0xff]
        %v361 = vld [vmem:[%s1 + $0x338] sm:$0xff]
        %v362 = vld [vmem:[%s1 + $0x340] sm:$0xff]
        %v363 = vld [vmem:[%s1 + $0x348] sm:$0xff]
        %v364 = vld [vmem:[%s1 + $0x350] sm:$0xff]
        %v365 = vld [vmem:[%s1 + $0x358] sm:$0xff]
        %v366 = vld [vmem:[%s1 + $0x360] sm:$0xff]
        %v367 = vld [vmem:[%s1 + $0x368] sm:$0xff]
        %v368 = vld [vmem:[%s1 + $0x370] sm:$0xff]
        %v369 = vld [vmem:[%s1 + $0x378] sm:$0xff]
        %v370 = vld [vmem:[%s1 + $0x380] sm:$0xff]
        %v371 = vld [vmem:[%s1 + $0x388] sm:$0xff]
        %v372 = vld [vmem:[%s1 + $0x390] sm:$0xff]
        %v373 = vld [vmem:[%s1 + $0x398] sm:$0xff]
        %v374 = vld [vmem:[%s1 + $0x3a0] sm:$0xff]
        %v375 = vld [vmem:[%s1 + $0x3a8] sm:$0xff]
        %v376 = vld [vmem:[%s1 + $0x3b0] sm:$0xff]
        %v377 = vld [vmem:[%s1 + $0x3b8] sm:$0xff]
        %v378 = vld [vmem:[%s1 + $0x3c0] sm:$0xff]
        %v379 = vld [vmem:[%s1 + $0x3c8] sm:$0xff]
        %v380 = vld [vmem:[%s1 + $0x3d0] sm:$0xff]
        %v381 = vld [vmem:[%s1 + $0x3d8] sm:$0xff]
        %v382 = vld [vmem:[%s1 + $0x3e0] sm:$0xff]
        %v383 = vld [vmem:[%s1 + $0x3e8] sm:$0xff]
        %v384 = vld [vmem:[%s1 + $0x3f0] sm:$0xff]
        %v385 = vld [vmem:[%s1 + $0x3f8] sm:$0xff]
        %v386 = vld [vmem:[%s1 + $0x400] sm:$0xff]
        %v387 = vld [vmem:[%s1 + $0x408] sm:$0xff]
        %v388 = vld [vmem:[%s1 + $0x410] sm:$0xff]
        %v389 = vld [vmem:[%s1 + $0x418] sm:$0xff]
        %v390 = vld [vmem:[%s1 + $0x420] sm:$0xff]
        %v391 = vld [vmem:[%s1 + $0x428] sm:$0xff]
        %v392 = vld [vmem:[%s1 + $0x430] sm:$0xff]
        %v393 = vld [vmem:[%s1 + $0x438] sm:$0xff]
        %v394 = vld [vmem:[%s1 + $0x440] sm:$0xff]
        %v395 = vld [vmem:[%s1 + $0x448] sm:$0xff]
        %v396 = vld [vmem:[%s1 + $0x450] sm:$0xff]
        %v397 = vld [vmem:[%s1 + $0x458] sm:$0xff]
        %v398 = vld [vmem:[%s1 + $0x460] sm:$0xff]
        %v399 = vld [vmem:[%s1 + $0x468] sm:$0xff]
        %v400 = vld [vmem:[%s1 + $0x470] sm:$0xff]
        %v401 = vld [vmem:[%s1 + $0x478] sm:$0xff]
        %402 = vmatprep.subr.mxu0 0.0
        %403 = vmatpush1.msra.mxu0 %v258
        %404 = vmatprep.subr.mxu0 0.0
        %405 = vmatpush1.msra.mxu0 %v259
        %406 = vmatprep.subr.mxu0 0.0
        %407 = vmatpush1.msra.mxu0 %v260
        %408 = vmatprep.subr.mxu0 0.0
        %409 = vmatpush1.msra.mxu0 %v261
        %410 = vmatprep.subr.mxu0 0.0
        %411 = vmatpush1.msra.mxu0 %v262
        %412 = vmatprep.subr.mxu0 0.0
        %413 = vmatpush1.msra.mxu0 %v263
        %414 = vmatprep.subr.mxu0 0.0
        %415 = vmatpush1.msra.mxu0 %v264
        %416 = vmatprep.subr.mxu0 0.0
        %417 = vmatpush1.msra.mxu0 %v265
        %418 = vmatprep.subr.mxu0 0.0
        %419 = vmatpush1.msra.mxu0 %v266
        %420 = vmatprep.subr.mxu0 0.0
        %421 = vmatpush1.msra.mxu0 %v267
        %422 = vmatprep.subr.mxu0 0.0
        %423 = vmatpush1.msra.mxu0 %v268
        %424 = vmatprep.subr.mxu0 0.0
        %425 = vmatpush1.msra.mxu0 %v269
        %426 = vmatprep.subr.mxu0 0.0
        %427 = vmatpush1.msra.mxu0 %v270
        %428 = vmatprep.subr.mxu0 0.0
        %429 = vmatpush1.msra.mxu0 %v271
        %430 = vmatprep.subr.mxu0 0.0
        %431 = vmatpush1.msra.mxu0 %v272
        %432 = vmatprep.subr.mxu0 0.0
        %433 = vmatpush1.msra.mxu0 %v273
        %434 = vmatprep.subr.mxu0 0.0
        %435 = vmatpush1.msra.mxu0 %v274
        %436 = vmatprep.subr.mxu0 0.0
        %437 = vmatpush1.msra.mxu0 %v275
        %438 = vmatprep.subr.mxu0 0.0
        %439 = vmatpush1.msra.mxu0 %v276
        %440 = vmatprep.subr.mxu0 0.0
        %441 = vmatpush1.msra.mxu0 %v277
        %442 = vmatprep.subr.mxu0 0.0
        %443 = vmatpush1.msra.mxu0 %v278
        %444 = vmatprep.subr.mxu0 0.0
        %445 = vmatpush1.msra.mxu0 %v279
        %446 = vmatprep.subr.mxu0 0.0
        %447 = vmatpush1.msra.mxu0 %v280
        %448 = vmatprep.subr.mxu0 0.0
        %449 = vmatpush1.msra.mxu0 %v281
        %450 = vmatprep.subr.mxu0 0.0
        %451 = vmatpush1.msra.mxu0 %v282
        %452 = vmatprep.subr.mxu0 0.0
        %453 = vmatpush1.msra.mxu0 %v283
        %454 = vmatprep.subr.mxu0 0.0
        %455 = vmatpush1.msra.mxu0 %v284
        %456 = vmatprep.subr.mxu0 0.0
        %457 = vmatpush1.msra.mxu0 %v285
        %458 = vmatprep.subr.mxu0 0.0
        %459 = vmatpush1.msra.mxu0 %v286
        %460 = vmatprep.subr.mxu0 0.0
        %461 = vmatpush1.msra.mxu0 %v287
        %462 = vmatprep.subr.mxu0 0.0
        %463 = vmatpush1.msra.mxu0 %v288
        %464 = vmatprep.subr.mxu0 0.0
        %465 = vmatpush1.msra.mxu0 %v289
        %466 = vmatprep.mubr.f32.mxu0 %v213
        %467 = vmatmul.mubr.f32.gmra.mrb[0].mxu0 %v226
        %v468 = vpop.f32.mrb[0].mxu0
        %v469 = vadd.f32 0.0, %v468
        %v470 = vpop.f32.mrb[0].mxu0
        %471 = vmatprep.mubr.f32.mxu0 %v214
        %472 = vmatmul.mubr.f32.gmra.mrb[0].mxu0 %v227
        %v473 = vpop.f32.mrb[0].mxu0
        %v474 = vadd.f32 0.0, %v473
        %v475 = vpop.f32.mrb[0].mxu0
        %476 = vdwg.mxu0
        %477 = vmatprep.subr.mxu0 0.0
        %478 = vmatpush1.msra.mxu0 %v290
        %479 = vmatprep.subr.mxu0 0.0
        %480 = vmatpush1.msra.mxu0 %v291
        %481 = vmatprep.subr.mxu0 0.0
        %482 = vmatpush1.msra.mxu0 %v292
        %483 = vmatprep.subr.mxu0 0.0
        %484 = vmatpush1.msra.mxu0 %v293
        %485 = vmatprep.subr.mxu0 0.0
        %486 = vmatpush1.msra.mxu0 %v294
        %487 = vmatprep.subr.mxu0 0.0
        %488 = vmatpush1.msra.mxu0 %v295
        %489 = vmatprep.subr.mxu0 0.0
        %490 = vmatpush1.msra.mxu0 %v296
        %491 = vmatprep.subr.mxu0 0.0
        %492 = vmatpush1.msra.mxu0 %v297
        %493 = vmatprep.subr.mxu0 0.0
        %494 = vmatpush1.msra.mxu0 %v298
        %495 = vmatprep.subr.mxu0 0.0
        %496 = vmatpush1.msra.mxu0 %v299
        %497 = vmatprep.subr.mxu0 0.0
        %498 = vmatpush1.msra.mxu0 %v300
        %499 = vmatprep.subr.mxu0 0.0
        %500 = vmatpush1.msra.mxu0 %v301
        %501 = vmatprep.subr.mxu0 0.0
        %502 = vmatpush1.msra.mxu0 %v302
        %503 = vmatprep.subr.mxu0 0.0
        %504 = vmatpush1.msra.mxu0 %v303
        %505 = vmatprep.subr.mxu0 0.0
        %506 = vmatpush1.msra.mxu0 %v304
        %507 = vmatprep.subr.mxu0 0.0
        %508 = vmatpush1.msra.mxu0 %v305
        %509 = vmatprep.subr.mxu0 0.0
        %510 = vmatpush1.msra.mxu0 %v306
        %511 = vmatprep.subr.mxu0 0.0
        %512 = vmatpush1.msra.mxu0 %v307
        %513 = vmatprep.subr.mxu0 0.0
        %514 = vmatpush1.msra.mxu0 %v308
        %515 = vmatprep.subr.mxu0 0.0
        %516 = vmatpush1.msra.mxu0 %v309
        %517 = vmatprep.subr.mxu0 0.0
        %518 = vmatpush1.msra.mxu0 %v310
        %519 = vmatprep.subr.mxu0 0.0
        %520 = vmatpush1.msra.mxu0 %v311
        %521 = vmatprep.subr.mxu0 0.0
        %522 = vmatpush1.msra.mxu0 %v312
        %523 = vmatprep.subr.mxu0 0.0
        %524 = vmatpush1.msra.mxu0 %v313
        %525 = vmatprep.subr.mxu0 0.0
        %526 = vmatpush1.msra.mxu0 %v314
        %527 = vmatprep.subr.mxu0 0.0
        %528 = vmatpush1.msra.mxu0 %v315
        %529 = vmatprep.subr.mxu0 0.0
        %530 = vmatpush1.msra.mxu0 %v316
        %531 = vmatprep.subr.mxu0 0.0
        %532 = vmatpush1.msra.mxu0 %v317
        %533 = vmatprep.subr.mxu0 0.0
        %534 = vmatpush1.msra.mxu0 %v318
        %535 = vmatprep.subr.mxu0 0.0
        %536 = vmatpush1.msra.mxu0 %v319
        %537 = vmatprep.subr.mxu0 0.0
        %538 = vmatpush1.msra.mxu0 %v320
        %539 = vmatprep.subr.mxu0 0.0
        %540 = vmatpush1.msra.mxu0 %v321
        %541 = vmatprep.mubr.f32.mxu0 %v238
        %542 = vmatmul.mubr.f32.gmra.mrb[0].mxu0 %v232
        %v543 = vpop.f32.mrb[0].mxu0
        %v544 = vadd.f32 %v469, %v543
        %v545 = vpop.f32.mrb[0].mxu0
        %546 = vmatprep.mubr.f32.mxu0 %v239
        %547 = vmatmul.mubr.f32.gmra.mrb[0].mxu0 %v233
        %v548 = vpop.f32.mrb[0].mxu0
        %v549 = vadd.f32 %v474, %v548
        %v550 = vpop.f32.mrb[0].mxu0
        %551 = vdwg.mxu0
        %552 = vmatprep.subr.mxu0 0.0
        %553 = vmatpush1.msra.mxu0 %v322
        %554 = vmatprep.subr.mxu0 0.0
        %555 = vmatpush1.msra.mxu0 %v323
        %556 = vmatprep.subr.mxu0 0.0
        %557 = vmatpush1.msra.mxu0 %v324
        %558 = vmatprep.subr.mxu0 0.0
        %559 = vmatpush1.msra.mxu0 %v325
        %560 = vmatprep.subr.mxu0 0.0
        %561 = vmatpush1.msra.mxu0 %v326
        %562 = vmatprep.subr.mxu0 0.0
        %563 = vmatpush1.msra.mxu0 %v327
        %564 = vmatprep.subr.mxu0 0.0
        %565 = vmatpush1.msra.mxu0 %v328
        %566 = vmatprep.subr.mxu0 0.0
        %567 = vmatpush1.msra.mxu0 %v329
        %568 = vmatprep.subr.mxu0 0.0
        %569 = vmatpush1.msra.mxu0 %v330
        %570 = vmatprep.subr.mxu0 0.0
        %571 = vmatpush1.msra.mxu0 %v331
        %572 = vmatprep.subr.mxu0 0.0
        %573 = vmatpush1.msra.mxu0 %v332
        %574 = vmatprep.subr.mxu0 0.0
        %575 = vmatpush1.msra.mxu0 %v333
        %576 = vmatprep.subr.mxu0 0.0
        %577 = vmatpush1.msra.mxu0 %v334
        %578 = vmatprep.subr.mxu0 0.0
        %579 = vmatpush1.msra.mxu0 %v335
        %580 = vmatprep.subr.mxu0 0.0
        %581 = vmatpush1.msra.mxu0 %v336
        %582 = vmatprep.subr.mxu0 0.0
        %583 = vmatpush1.msra.mxu0 %v337
        %584 = vmatprep.subr.mxu0 0.0
        %585 = vmatpush1.msra.mxu0 %v338
        %586 = vmatprep.subr.mxu0 0.0
        %587 = vmatpush1.msra.mxu0 %v339
        %588 = vmatprep.subr.mxu0 0.0
        %589 = vmatpush1.msra.mxu0 %v340
        %590 = vmatprep.subr.mxu0 0.0
        %591 = vmatpush1.msra.mxu0 %v341
        %592 = vmatprep.subr.mxu0 0.0
        %593 = vmatpush1.msra.mxu0 %v342
        %594 = vmatprep.subr.mxu0 0.0
        %595 = vmatpush1.msra.mxu0 %v343
        %596 = vmatprep.subr.mxu0 0.0
        %597 = vmatpush1.msra.mxu0 %v344
        %598 = vmatprep.subr.mxu0 0.0
        %599 = vmatpush1.msra.mxu0 %v345
        %600 = vmatprep.subr.mxu0 0.0
        %601 = vmatpush1.msra.mxu0 %v346
        %602 = vmatprep.subr.mxu0 0.0
        %603 = vmatpush1.msra.mxu0 %v347
        %604 = vmatprep.subr.mxu0 0.0
        %605 = vmatpush1.msra.mxu0 %v348
        %606 = vmatprep.subr.mxu0 0.0
        %607 = vmatpush1.msra.mxu0 %v349
        %608 = vmatprep.subr.mxu0 0.0
        %609 = vmatpush1.msra.mxu0 %v350
        %610 = vmatprep.subr.mxu0 0.0
        %611 = vmatpush1.msra.mxu0 %v351
        %612 = vmatprep.subr.mxu0 0.0
        %613 = vmatpush1.msra.mxu0 %v352
        %614 = vmatprep.subr.mxu0 0.0
        %615 = vmatpush1.msra.mxu0 %v353
        %616 = vmatprep.mubr.f32.mxu0 %v244
        %617 = vmatmul.mubr.f32.gmra.mrb[0].mxu0 %v206
        %v618 = vpop.f32.mrb[0].mxu0
        %v619 = vadd.f32 %v544, %v618
        %v620 = vpop.f32.mrb[0].mxu0
        %621 = vmatprep.mubr.f32.mxu0 %v245
        %622 = vmatmul.mubr.f32.gmra.mrb[0].mxu0 %v207
        %v623 = vpop.f32.mrb[0].mxu0
        %v624 = vadd.f32 %v549, %v623
        %v625 = vpop.f32.mrb[0].mxu0
        %626 = vdwg.mxu0
        %627 = vmatprep.subr.mxu0 0.0
        %628 = vmatpush1.msra.mxu0 %v354
        %629 = vmatprep.subr.mxu0 0.0
        %630 = vmatpush1.msra.mxu0 %v355
        %631 = vmatprep.subr.mxu0 0.0
        %632 = vmatpush1.msra.mxu0 %v356
        %633 = vmatprep.subr.mxu0 0.0
        %634 = vmatpush1.msra.mxu0 %v357
        %635 = vmatprep.subr.mxu0 0.0
        %636 = vmatpush1.msra.mxu0 %v358
        %637 = vmatprep.subr.mxu0 0.0
        %638 = vmatpush1.msra.mxu0 %v359
        %639 = vmatprep.subr.mxu0 0.0
        %640 = vmatpush1.msra.mxu0 %v360
        %641 = vmatprep.subr.mxu0 0.0
        %642 = vmatpush1.msra.mxu0 %v361
        %643 = vmatprep.subr.mxu0 0.0
        %644 = vmatpush1.msra.mxu0 %v362
        %645 = vmatprep.subr.mxu0 0.0
        %646 = vmatpush1.msra.mxu0 %v363
        %647 = vmatprep.subr.mxu0 0.0
        %648 = vmatpush1.msra.mxu0 %v364
        %649 = vmatprep.subr.mxu0 0.0
        %650 = vmatpush1.msra.mxu0 %v365
        %651 = vmatprep.subr.mxu0 0.0
        %652 = vmatpush1.msra.mxu0 %v366
        %653 = vmatprep.subr.mxu0 0.0
        %654 = vmatpush1.msra.mxu0 %v367
        %655 = vmatprep.subr.mxu0 0.0
        %656 = vmatpush1.msra.mxu0 %v368
        %657 = vmatprep.subr.mxu0 0.0
        %658 = vmatpush1.msra.mxu0 %v369
        %659 = vmatprep.subr.mxu0 0.0
        %660 = vmatpush1.msra.mxu0 %v370
        %661 = vmatprep.subr.mxu0 0.0
        %662 = vmatpush1.msra.mxu0 %v371
        %663 = vmatprep.subr.mxu0 0.0
        %664 = vmatpush1.msra.mxu0 %v372
        %665 = vmatprep.subr.mxu0 0.0
        %666 = vmatpush1.msra.mxu0 %v373
        %667 = vmatprep.subr.mxu0 0.0
        %668 = vmatpush1.msra.mxu0 %v374
        %669 = vmatprep.subr.mxu0 0.0
        %670 = vmatpush1.msra.mxu0 %v375
        %671 = vmatprep.subr.mxu0 0.0
        %672 = vmatpush1.msra.mxu0 %v376
        %673 = vmatprep.subr.mxu0 0.0
        %674 = vmatpush1.msra.mxu0 %v377
        %675 = vmatprep.subr.mxu0 0.0
        %676 = vmatpush1.msra.mxu0 %v378
        %677 = vmatprep.subr.mxu0 0.0
        %678 = vmatpush1.msra.mxu0 %v379
        %679 = vmatprep.subr.mxu0 0.0
        %680 = vmatpush1.msra.mxu0 %v380
        %681 = vmatprep.subr.mxu0 0.0
        %682 = vmatpush1.msra.mxu0 %v381
        %683 = vmatprep.subr.mxu0 0.0
        %684 = vmatpush1.msra.mxu0 %v382
        %685 = vmatprep.subr.mxu0 0.0
        %686 = vmatpush1.msra.mxu0 %v383
        %687 = vmatprep.subr.mxu0 0.0
        %688 = vmatpush1.msra.mxu0 %v384
        %689 = vmatprep.subr.mxu0 0.0
        %690 = vmatpush1.msra.mxu0 %v385
        %691 = vmatprep.mubr.f32.mxu0 %v220
        %692 = vmatmul.mubr.f32.gmra.mrb[0].mxu0 %v250
        %v693 = vpop.f32.mrb[0].mxu0
        %v694 = vadd.f32 %v619, %v693
        %v695 = vpop.f32.mrb[0].mxu0
        %696 = vmatprep.mubr.f32.mxu0 %v221
        %697 = vmatmul.mubr.f32.gmra.mrb[0].mxu0 %v251
        %v698 = vpop.f32.mrb[0].mxu0
        %v699 = vadd.f32 %v624, %v698
        %v700 = vpop.f32.mrb[0].mxu0
        %701 = vdwg.mxu0
        %702 = vmatprep.subr.mxu0 0.0
        %703 = vmatpush1.msra.mxu0 %v386
        %704 = vmatprep.subr.mxu0 0.0
        %705 = vmatpush1.msra.mxu0 %v387
        %706 = vmatprep.subr.mxu0 0.0
        %707 = vmatpush1.msra.mxu0 %v388
        %708 = vmatprep.subr.mxu0 0.0
        %709 = vmatpush1.msra.mxu0 %v389
        %710 = vmatprep.subr.mxu0 0.0
        %711 = vmatpush1.msra.mxu0 %v390
        %712 = vmatprep.subr.mxu0 0.0
        %713 = vmatpush1.msra.mxu0 %v391
        %714 = vmatprep.subr.mxu0 0.0
        %715 = vmatpush1.msra.mxu0 %v392
        %716 = vmatprep.subr.mxu0 0.0
        %717 = vmatpush1.msra.mxu0 %v393
        %718 = vmatprep.subr.mxu0 0.0
        %719 = vmatpush1.msra.mxu0 %v394
        %720 = vmatprep.subr.mxu0 0.0
        %721 = vmatpush1.msra.mxu0 %v395
        %722 = vmatprep.subr.mxu0 0.0
        %723 = vmatpush1.msra.mxu0 %v396
        %724 = vmatprep.subr.mxu0 0.0
        %725 = vmatpush1.msra.mxu0 %v397
        %726 = vmatprep.subr.mxu0 0.0
        %727 = vmatpush1.msra.mxu0 %v398
        %728 = vmatprep.subr.mxu0 0.0
        %729 = vmatpush1.msra.mxu0 %v399
        %730 = vmatprep.subr.mxu0 0.0
        %731 = vmatpush1.msra.mxu0 %v400
        %732 = vmatprep.subr.mxu0 0.0
        %733 = vmatpush1.msra.mxu0 %v401
        %734 = vmatprep.subr.mxu0 0.0
        %735 = vmatpush1.msra.mxu0 0.0
        %736 = vmatprep.subr.mxu0 0.0
        %737 = vmatpush1.msra.mxu0 0.0
        %738 = vmatprep.subr.mxu0 0.0
        %739 = vmatpush1.msra.mxu0 0.0
        %740 = vmatprep.subr.mxu0 0.0
        %741 = vmatpush1.msra.mxu0 0.0
        %742 = vmatprep.subr.mxu0 0.0
        %743 = vmatpush1.msra.mxu0 0.0
        %744 = vmatprep.subr.mxu0 0.0
        %745 = vmatpush1.msra.mxu0 0.0
        %746 = vmatprep.subr.mxu0 0.0
        %747 = vmatpush1.msra.mxu0 0.0
        %748 = vmatprep.subr.mxu0 0.0
        %749 = vmatpush1.msra.mxu0 0.0
        %750 = vmatprep.subr.mxu0 0.0
        %751 = vmatpush1.msra.mxu0 0.0
        %752 = vmatprep.subr.mxu0 0.0
        %753 = vmatpush1.msra.mxu0 0.0
        %754 = vmatprep.subr.mxu0 0.0
        %755 = vmatpush1.msra.mxu0 0.0
        %756 = vmatprep.subr.mxu0 0.0
        %757 = vmatpush1.msra.mxu0 0.0
        %758 = vmatprep.subr.mxu0 0.0
        %759 = vmatpush1.msra.mxu0 0.0
        %760 = vmatprep.subr.mxu0 0.0
        %761 = vmatpush1.msra.mxu0 0.0
        %762 = vmatprep.subr.mxu0 0.0
        %763 = vmatpush1.msra.mxu0 0.0
        %764 = vmatprep.subr.mxu0 0.0
        %765 = vmatpush1.msra.mxu0 0.0
        %766 = vmatprep.mubr.f32.mxu0 0.0
        %767 = vmatmul.mubr.f32.gmra.mrb[0].mxu0 %v256
        %v768 = vpop.f32.mrb[0].mxu0
        %v769 = vadd.f32 %v694, %v768
        %v770 = vpop.f32.mrb[0].mxu0
        %771 = vmatprep.mubr.f32.mxu0 0.0
        %772 = vmatmul.mubr.f32.gmra.mrb[0].mxu0 %v257
        %v773 = vpop.f32.mrb[0].mxu0
        %v774 = vadd.f32 %v699, %v773
        %v775 = vpop.f32.mrb[0].mxu0
        %776 = vdwg.mxu0
        %v777 = vmax.f32 %v769, 0.0
        %v778 = vmax.f32 %v774, 0.0
        %v779 = vld [vmem:[%s2] sm:$0xff]
        %v780 = vld [vmem:[%s2 + $0x8] sm:$0xff]
        %v781 = vld [vmem:[%s2 + $0x10] sm:$0xff]
        %v782 = vld [vmem:[%s2 + $0x18] sm:$0xff]
        %v783 = vld [vmem:[%s2 + $0x20] sm:$0xff]
        %v784 = vld [vmem:[%s2 + $0x28] sm:$0xff]
        %v785 = vld [vmem:[%s2 + $0x30] sm:$0xff]
        %v786 = vld [vmem:[%s2 + $0x38] sm:$0xff]
        %vm787 = vcmask 523264
        %v789 = vsel %vm787, %v777, 0
        %v792 = vsel %vm787, %v778, 0
        %794 = vmatprep.subr.mxu0 0.0
        %795 = vmatpush1.msra.mxu0 %v779
        %796 = vmatprep.subr.mxu0 0.0
        %797 = vmatpush1.msra.mxu0 %v780
        %798 = vmatprep.subr.mxu0 0.0
        %799 = vmatpush1.msra.mxu0 %v781
        %800 = vmatprep.subr.mxu0 0.0
        %801 = vmatpush1.msra.mxu0 %v782
        %802 = vmatprep.subr.mxu0 0.0
        %803 = vmatpush1.msra.mxu0 %v783
        %804 = vmatprep.subr.mxu0 0.0
        %805 = vmatpush1.msra.mxu0 %v784
        %806 = vmatprep.subr.mxu0 0.0
        %807 = vmatpush1.msra.mxu0 %v785
        %808 = vmatprep.subr.mxu0 0.0
        %809 = vmatpush1.msra.mxu0 %v786
        %810 = vmatprep.subr.mxu0 0.0
        %811 = vmatpush1.msra.mxu0 0.0
        %812 = vmatprep.subr.mxu0 0.0
        %813 = vmatpush1.msra.mxu0 0.0
        %814 = vmatprep.subr.mxu0 0.0
        %815 = vmatpush1.msra.mxu0 0.0
        %816 = vmatprep.subr.mxu0 0.0
        %817 = vmatpush1.msra.mxu0 0.0
        %818 = vmatprep.subr.mxu0 0.0
        %819 = vmatpush1.msra.mxu0 0.0
        %820 = vmatprep.subr.mxu0 0.0
        %821 = vmatpush1.msra.mxu0 0.0
        %822 = vmatprep.subr.mxu0 0.0
        %823 = vmatpush1.msra.mxu0 0.0
        %824 = vmatprep.subr.mxu0 0.0
        %825 = vmatpush1.msra.mxu0 0.0
        %826 = vmatprep.subr.mxu0 0.0
        %827 = vmatpush1.msra.mxu0 0.0
        %828 = vmatprep.subr.mxu0 0.0
        %829 = vmatpush1.msra.mxu0 0.0
        %830 = vmatprep.subr.mxu0 0.0
        %831 = vmatpush1.msra.mxu0 0.0
        %832 = vmatprep.subr.mxu0 0.0
        %833 = vmatpush1.msra.mxu0 0.0
        %834 = vmatprep.subr.mxu0 0.0
        %835 = vmatpush1.msra.mxu0 0.0
        %836 = vmatprep.subr.mxu0 0.0
        %837 = vmatpush1.msra.mxu0 0.0
        %838 = vmatprep.subr.mxu0 0.0
        %839 = vmatpush1.msra.mxu0 0.0
        %840 = vmatprep.subr.mxu0 0.0
        %841 = vmatpush1.msra.mxu0 0.0
        %842 = vmatprep.subr.mxu0 0.0
        %843 = vmatpush1.msra.mxu0 0.0
        %844 = vmatprep.subr.mxu0 0.0
        %845 = vmatpush1.msra.mxu0 0.0
        %846 = vmatprep.subr.mxu0 0.0
        %847 = vmatpush1.msra.mxu0 0.0
        %848 = vmatprep.subr.mxu0 0.0
        %849 = vmatpush1.msra.mxu0 0.0
        %850 = vmatprep.subr.mxu0 0.0
        %851 = vmatpush1.msra.mxu0 0.0
        %852 = vmatprep.subr.mxu0 0.0
        %853 = vmatpush1.msra.mxu0 0.0
        %854 = vmatprep.subr.mxu0 0.0
        %855 = vmatpush1.msra.mxu0 0.0
        %856 = vmatprep.subr.mxu0 0.0
        %857 = vmatpush1.msra.mxu0 0.0
        %858 = vmatprep.mubr.f32.mxu0 0.0
        %859 = vmatmul.mubr.f32.gmra.mrb[0].mxu0 %v789
        %v860 = vpop.f32.mrb[0].mxu0
        %v861 = vadd.f32 0.0, %v860
        %v862 = vpop.f32.mrb[0].mxu0
        %863 = vmatprep.mubr.f32.mxu0 0.0
        %864 = vmatmul.mubr.f32.gmra.mrb[0].mxu0 %v792
        %v865 = vpop.f32.mrb[0].mxu0
        %v866 = vadd.f32 0.0, %v865
        %v867 = vpop.f32.mrb[0].mxu0
        %868 = vdwg.mxu0
        %v869 = vadd.f32 %v169, %v861
        %v870 = vadd.f32 %v170, %v866
        %v871 = vmax.f32 %v869, 0.0
        %v872 = vmax.f32 %v870, 0.0
        %v873 = vrot.slane %v871, 7
        %v874 = vrot.slane %v872, 7
        %v875 = vsel %vm210, %v873, %v874
        %v876 = vsel %vm210, %v874, %v873
        %v877 = vsel %vm200, 0.0, %v876
        %v878 = vsel %vm201, 0.0, %v875
        %v879 = vrot.slane %v871, 1
        %v880 = vrot.slane %v872, 1
        %v881 = vsel %vm217, %v879, %v880
        %v882 = vsel %vm217, %v880, %v879
        %v883 = vsel %vm202, 0.0, %v881
        %v884 = vsel %vm203, 0.0, %v882
        %885 = vrot.lane.b32.xlu0 %v877, 8
        %v886 = vpop.permute.xlu0 %885
        %887 = vrot.lane.b32.xlu0 %v878, 8
        %v888 = vpop.permute.xlu0 %887
        %v889 = vsel %vm204, 0.0, %v886
        %v890 = vsel %vm204, 0.0, %v888
        %891 = vrot.lane.b32.xlu0 %v877, 120
        %v892 = vpop.permute.xlu0 %891
        %893 = vrot.lane.b32.xlu0 %v878, 120
        %v894 = vpop.permute.xlu0 %893
        %v895 = vsel %vm205, 0.0, %v892
        %v896 = vsel %vm205, 0.0, %v894
        %897 = vrot.lane.b32.xlu0 %v871, 8
        %v898 = vpop.permute.xlu0 %897
        %899 = vrot.lane.b32.xlu0 %v872, 8
        %v900 = vpop.permute.xlu0 %899
        %v901 = vsel %vm204, 0.0, %v898
        %v902 = vsel %vm204, 0.0, %v900
        %903 = vrot.lane.b32.xlu0 %v871, 120
        %v904 = vpop.permute.xlu0 %903
        %905 = vrot.lane.b32.xlu0 %v872, 120
        %v906 = vpop.permute.xlu0 %905
        %v907 = vsel %vm205, 0.0, %v904
        %v908 = vsel %vm205, 0.0, %v906
        %909 = vrot.lane.b32.xlu0 %v883, 8
        %v910 = vpop.permute.xlu0 %909
        %911 = vrot.lane.b32.xlu0 %v884, 8
        %v912 = vpop.permute.xlu0 %911
        %v913 = vsel %vm204, 0.0, %v910
        %v914 = vsel %vm204, 0.0, %v912
        %915 = vrot.lane.b32.xlu0 %v883, 120
        %v916 = vpop.permute.xlu0 %915
        %917 = vrot.lane.b32.xlu0 %v884, 120
        %v918 = vpop.permute.xlu0 %917
        %v919 = vsel %vm205, 0.0, %v916
        %v920 = vsel %vm205, 0.0, %v918
        %s921 = scalar_lea.vmem %s1, 1152
        %v922 = vld [vmem:[%s921] sm:$0xff]
        %v923 = vld [vmem:[%s921 + $0x8] sm:$0xff]
        %v924 = vld [vmem:[%s921 + $0x10] sm:$0xff]
        %v925 = vld [vmem:[%s921 + $0x18] sm:$0xff]
        %v926 = vld [vmem:[%s921 + $0x20] sm:$0xff]
        %v927 = vld [vmem:[%s921 + $0x28] sm:$0xff]
        %v928 = vld [vmem:[%s921 + $0x30] sm:$0xff]
        %v929 = vld [vmem:[%s921 + $0x38] sm:$0xff]
        %v930 = vld [vmem:[%s921 + $0x40] sm:$0xff]
        %v931 = vld [vmem:[%s921 + $0x48] sm:$0xff]
        %v932 = vld [vmem:[%s921 + $0x50] sm:$0xff]
        %v933 = vld [vmem:[%s921 + $0x58] sm:$0xff]
        %v934 = vld [vmem:[%s921 + $0x60] sm:$0xff]
        %v935 = vld [vmem:[%s921 + $0x68] sm:$0xff]
        %v936 = vld [vmem:[%s921 + $0x70] sm:$0xff]
        %v937 = vld [vmem:[%s921 + $0x78] sm:$0xff]
        %v938 = vld [vmem:[%s921 + $0x80] sm:$0xff]
        %v939 = vld [vmem:[%s921 + $0x88] sm:$0xff]
        %v940 = vld [vmem:[%s921 + $0x90] sm:$0xff]
        %v941 = vld [vmem:[%s921 + $0x98] sm:$0xff]
        %v942 = vld [vmem:[%s921 + $0xa0] sm:$0xff]
        %v943 = vld [vmem:[%s921 + $0xa8] sm:$0xff]
        %v944 = vld [vmem:[%s921 + $0xb0] sm:$0xff]
        %v945 = vld [vmem:[%s921 + $0xb8] sm:$0xff]
        %v946 = vld [vmem:[%s921 + $0xc0] sm:$0xff]
        %v947 = vld [vmem:[%s921 + $0xc8] sm:$0xff]
        %v948 = vld [vmem:[%s921 + $0xd0] sm:$0xff]
        %v949 = vld [vmem:[%s921 + $0xd8] sm:$0xff]
        %v950 = vld [vmem:[%s921 + $0xe0] sm:$0xff]
        %v951 = vld [vmem:[%s921 + $0xe8] sm:$0xff]
        %v952 = vld [vmem:[%s921 + $0xf0] sm:$0xff]
        %v953 = vld [vmem:[%s921 + $0xf8] sm:$0xff]
        %v954 = vld [vmem:[%s921 + $0x100] sm:$0xff]
        %v955 = vld [vmem:[%s921 + $0x108] sm:$0xff]
        %v956 = vld [vmem:[%s921 + $0x110] sm:$0xff]
        %v957 = vld [vmem:[%s921 + $0x118] sm:$0xff]
        %v958 = vld [vmem:[%s921 + $0x120] sm:$0xff]
        %v959 = vld [vmem:[%s921 + $0x128] sm:$0xff]
        %v960 = vld [vmem:[%s921 + $0x130] sm:$0xff]
        %v961 = vld [vmem:[%s921 + $0x138] sm:$0xff]
        %v962 = vld [vmem:[%s921 + $0x140] sm:$0xff]
        %v963 = vld [vmem:[%s921 + $0x148] sm:$0xff]
        %v964 = vld [vmem:[%s921 + $0x150] sm:$0xff]
        %v965 = vld [vmem:[%s921 + $0x158] sm:$0xff]
        %v966 = vld [vmem:[%s921 + $0x160] sm:$0xff]
        %v967 = vld [vmem:[%s921 + $0x168] sm:$0xff]
        %v968 = vld [vmem:[%s921 + $0x170] sm:$0xff]
        %v969 = vld [vmem:[%s921 + $0x178] sm:$0xff]
        %v970 = vld [vmem:[%s921 + $0x180] sm:$0xff]
        %v971 = vld [vmem:[%s921 + $0x188] sm:$0xff]
        %v972 = vld [vmem:[%s921 + $0x190] sm:$0xff]
        %v973 = vld [vmem:[%s921 + $0x198] sm:$0xff]
        %v974 = vld [vmem:[%s921 + $0x1a0] sm:$0xff]
        %v975 = vld [vmem:[%s921 + $0x1a8] sm:$0xff]
        %v976 = vld [vmem:[%s921 + $0x1b0] sm:$0xff]
        %v977 = vld [vmem:[%s921 + $0x1b8] sm:$0xff]
        %v978 = vld [vmem:[%s921 + $0x1c0] sm:$0xff]
        %v979 = vld [vmem:[%s921 + $0x1c8] sm:$0xff]
        %v980 = vld [vmem:[%s921 + $0x1d0] sm:$0xff]
        %v981 = vld [vmem:[%s921 + $0x1d8] sm:$0xff]
        %v982 = vld [vmem:[%s921 + $0x1e0] sm:$0xff]
        %v983 = vld [vmem:[%s921 + $0x1e8] sm:$0xff]
        %v984 = vld [vmem:[%s921 + $0x1f0] sm:$0xff]
        %v985 = vld [vmem:[%s921 + $0x1f8] sm:$0xff]
        %v986 = vld [vmem:[%s921 + $0x200] sm:$0xff]
        %v987 = vld [vmem:[%s921 + $0x208] sm:$0xff]
        %v988 = vld [vmem:[%s921 + $0x210] sm:$0xff]
        %v989 = vld [vmem:[%s921 + $0x218] sm:$0xff]
        %v990 = vld [vmem:[%s921 + $0x220] sm:$0xff]
        %v991 = vld [vmem:[%s921 + $0x228] sm:$0xff]
        %v992 = vld [vmem:[%s921 + $0x230] sm:$0xff]
        %v993 = vld [vmem:[%s921 + $0x238] sm:$0xff]
        %v994 = vld [vmem:[%s921 + $0x240] sm:$0xff]
        %v995 = vld [vmem:[%s921 + $0x248] sm:$0xff]
        %v996 = vld [vmem:[%s921 + $0x250] sm:$0xff]
        %v997 = vld [vmem:[%s921 + $0x258] sm:$0xff]
        %v998 = vld [vmem:[%s921 + $0x260] sm:$0xff]
        %v999 = vld [vmem:[%s921 + $0x268] sm:$0xff]
        %v1000 = vld [vmem:[%s921 + $0x270] sm:$0xff]
        %v1001 = vld [vmem:[%s921 + $0x278] sm:$0xff]
        %v1002 = vld [vmem:[%s921 + $0x280] sm:$0xff]
        %v1003 = vld [vmem:[%s921 + $0x288] sm:$0xff]
        %v1004 = vld [vmem:[%s921 + $0x290] sm:$0xff]
        %v1005 = vld [vmem:[%s921 + $0x298] sm:$0xff]
        %v1006 = vld [vmem:[%s921 + $0x2a0] sm:$0xff]
        %v1007 = vld [vmem:[%s921 + $0x2a8] sm:$0xff]
        %v1008 = vld [vmem:[%s921 + $0x2b0] sm:$0xff]
        %v1009 = vld [vmem:[%s921 + $0x2b8] sm:$0xff]
        %v1010 = vld [vmem:[%s921 + $0x2c0] sm:$0xff]
        %v1011 = vld [vmem:[%s921 + $0x2c8] sm:$0xff]
        %v1012 = vld [vmem:[%s921 + $0x2d0] sm:$0xff]
        %v1013 = vld [vmem:[%s921 + $0x2d8] sm:$0xff]
        %v1014 = vld [vmem:[%s921 + $0x2e0] sm:$0xff]
        %v1015 = vld [vmem:[%s921 + $0x2e8] sm:$0xff]
        %v1016 = vld [vmem:[%s921 + $0x2f0] sm:$0xff]
        %v1017 = vld [vmem:[%s921 + $0x2f8] sm:$0xff]
        %v1018 = vld [vmem:[%s921 + $0x300] sm:$0xff]
        %v1019 = vld [vmem:[%s921 + $0x308] sm:$0xff]
        %v1020 = vld [vmem:[%s921 + $0x310] sm:$0xff]
        %v1021 = vld [vmem:[%s921 + $0x318] sm:$0xff]
        %v1022 = vld [vmem:[%s921 + $0x320] sm:$0xff]
        %v1023 = vld [vmem:[%s921 + $0x328] sm:$0xff]
        %v1024 = vld [vmem:[%s921 + $0x330] sm:$0xff]
        %v1025 = vld [vmem:[%s921 + $0x338] sm:$0xff]
        %v1026 = vld [vmem:[%s921 + $0x340] sm:$0xff]
        %v1027 = vld [vmem:[%s921 + $0x348] sm:$0xff]
        %v1028 = vld [vmem:[%s921 + $0x350] sm:$0xff]
        %v1029 = vld [vmem:[%s921 + $0x358] sm:$0xff]
        %v1030 = vld [vmem:[%s921 + $0x360] sm:$0xff]
        %v1031 = vld [vmem:[%s921 + $0x368] sm:$0xff]
        %v1032 = vld [vmem:[%s921 + $0x370] sm:$0xff]
        %v1033 = vld [vmem:[%s921 + $0x378] sm:$0xff]
        %v1034 = vld [vmem:[%s921 + $0x380] sm:$0xff]
        %v1035 = vld [vmem:[%s921 + $0x388] sm:$0xff]
        %v1036 = vld [vmem:[%s921 + $0x390] sm:$0xff]
        %v1037 = vld [vmem:[%s921 + $0x398] sm:$0xff]
        %v1038 = vld [vmem:[%s921 + $0x3a0] sm:$0xff]
        %v1039 = vld [vmem:[%s921 + $0x3a8] sm:$0xff]
        %v1040 = vld [vmem:[%s921 + $0x3b0] sm:$0xff]
        %v1041 = vld [vmem:[%s921 + $0x3b8] sm:$0xff]
        %v1042 = vld [vmem:[%s921 + $0x3c0] sm:$0xff]
        %v1043 = vld [vmem:[%s921 + $0x3c8] sm:$0xff]
        %v1044 = vld [vmem:[%s921 + $0x3d0] sm:$0xff]
        %v1045 = vld [vmem:[%s921 + $0x3d8] sm:$0xff]
        %v1046 = vld [vmem:[%s921 + $0x3e0] sm:$0xff]
        %v1047 = vld [vmem:[%s921 + $0x3e8] sm:$0xff]
        %v1048 = vld [vmem:[%s921 + $0x3f0] sm:$0xff]
        %v1049 = vld [vmem:[%s921 + $0x3f8] sm:$0xff]
        %v1050 = vld [vmem:[%s921 + $0x400] sm:$0xff]
        %v1051 = vld [vmem:[%s921 + $0x408] sm:$0xff]
        %v1052 = vld [vmem:[%s921 + $0x410] sm:$0xff]
        %v1053 = vld [vmem:[%s921 + $0x418] sm:$0xff]
        %v1054 = vld [vmem:[%s921 + $0x420] sm:$0xff]
        %v1055 = vld [vmem:[%s921 + $0x428] sm:$0xff]
        %v1056 = vld [vmem:[%s921 + $0x430] sm:$0xff]
        %v1057 = vld [vmem:[%s921 + $0x438] sm:$0xff]
        %v1058 = vld [vmem:[%s921 + $0x440] sm:$0xff]
        %v1059 = vld [vmem:[%s921 + $0x448] sm:$0xff]
        %v1060 = vld [vmem:[%s921 + $0x450] sm:$0xff]
        %v1061 = vld [vmem:[%s921 + $0x458] sm:$0xff]
        %v1062 = vld [vmem:[%s921 + $0x460] sm:$0xff]
        %v1063 = vld [vmem:[%s921 + $0x468] sm:$0xff]
        %v1064 = vld [vmem:[%s921 + $0x470] sm:$0xff]
        %v1065 = vld [vmem:[%s921 + $0x478] sm:$0xff]
        %1066 = vmatprep.subr.mxu0 0.0
        %1067 = vmatpush1.msra.mxu0 %v922
        %1068 = vmatprep.subr.mxu0 0.0
        %1069 = vmatpush1.msra.mxu0 %v923
        %1070 = vmatprep.subr.mxu0 0.0
        %1071 = vmatpush1.msra.mxu0 %v924
        %1072 = vmatprep.subr.mxu0 0.0
        %1073 = vmatpush1.msra.mxu0 %v925
        %1074 = vmatprep.subr.mxu0 0.0
        %1075 = vmatpush1.msra.mxu0 %v926
        %1076 = vmatprep.subr.mxu0 0.0
        %1077 = vmatpush1.msra.mxu0 %v927
        %1078 = vmatprep.subr.mxu0 0.0
        %1079 = vmatpush1.msra.mxu0 %v928
        %1080 = vmatprep.subr.mxu0 0.0
        %1081 = vmatpush1.msra.mxu0 %v929
        %1082 = vmatprep.subr.mxu0 0.0
        %1083 = vmatpush1.msra.mxu0 %v930
        %1084 = vmatprep.subr.mxu0 0.0
        %1085 = vmatpush1.msra.mxu0 %v931
        %1086 = vmatprep.subr.mxu0 0.0
        %1087 = vmatpush1.msra.mxu0 %v932
        %1088 = vmatprep.subr.mxu0 0.0
        %1089 = vmatpush1.msra.mxu0 %v933
        %1090 = vmatprep.subr.mxu0 0.0
        %1091 = vmatpush1.msra.mxu0 %v934
        %1092 = vmatprep.subr.mxu0 0.0
        %1093 = vmatpush1.msra.mxu0 %v935
        %1094 = vmatprep.subr.mxu0 0.0
        %1095 = vmatpush1.msra.mxu0 %v936
        %1096 = vmatprep.subr.mxu0 0.0
        %1097 = vmatpush1.msra.mxu0 %v937
        %1098 = vmatprep.subr.mxu0 0.0
        %1099 = vmatpush1.msra.mxu0 %v938
        %1100 = vmatprep.subr.mxu0 0.0
        %1101 = vmatpush1.msra.mxu0 %v939
        %1102 = vmatprep.subr.mxu0 0.0
        %1103 = vmatpush1.msra.mxu0 %v940
        %1104 = vmatprep.subr.mxu0 0.0
        %1105 = vmatpush1.msra.mxu0 %v941
        %1106 = vmatprep.subr.mxu0 0.0
        %1107 = vmatpush1.msra.mxu0 %v942
        %1108 = vmatprep.subr.mxu0 0.0
        %1109 = vmatpush1.msra.mxu0 %v943
        %1110 = vmatprep.subr.mxu0 0.0
        %1111 = vmatpush1.msra.mxu0 %v944
        %1112 = vmatprep.subr.mxu0 0.0
        %1113 = vmatpush1.msra.mxu0 %v945
        %1114 = vmatprep.subr.mxu0 0.0
        %1115 = vmatpush1.msra.mxu0 %v946
        %1116 = vmatprep.subr.mxu0 0.0
        %1117 = vmatpush1.msra.mxu0 %v947
        %1118 = vmatprep.subr.mxu0 0.0
        %1119 = vmatpush1.msra.mxu0 %v948
        %1120 = vmatprep.subr.mxu0 0.0
        %1121 = vmatpush1.msra.mxu0 %v949
        %1122 = vmatprep.subr.mxu0 0.0
        %1123 = vmatpush1.msra.mxu0 %v950
        %1124 = vmatprep.subr.mxu0 0.0
        %1125 = vmatpush1.msra.mxu0 %v951
        %1126 = vmatprep.subr.mxu0 0.0
        %1127 = vmatpush1.msra.mxu0 %v952
        %1128 = vmatprep.subr.mxu0 0.0
        %1129 = vmatpush1.msra.mxu0 %v953
        %1130 = vmatprep.mubr.f32.mxu0 %v877
        %1131 = vmatmul.mubr.f32.gmra.mrb[0].mxu0 %v889
        %v1132 = vpop.f32.mrb[0].mxu0
        %v1133 = vadd.f32 0.0, %v1132
        %v1134 = vpop.f32.mrb[0].mxu0
        %1135 = vmatprep.mubr.f32.mxu0 %v878
        %1136 = vmatmul.mubr.f32.gmra.mrb[0].mxu0 %v890
        %v1137 = vpop.f32.mrb[0].mxu0
        %v1138 = vadd.f32 0.0, %v1137
        %v1139 = vpop.f32.mrb[0].mxu0
        %1140 = vdwg.mxu0
        %1141 = vmatprep.subr.mxu0 0.0
        %1142 = vmatpush1.msra.mxu0 %v954
        %1143 = vmatprep.subr.mxu0 0.0
        %1144 = vmatpush1.msra.mxu0 %v955
        %1145 = vmatprep.subr.mxu0 0.0
        %1146 = vmatpush1.msra.mxu0 %v956
        %1147 = vmatprep.subr.mxu0 0.0
        %1148 = vmatpush1.msra.mxu0 %v957
        %1149 = vmatprep.subr.mxu0 0.0
        %1150 = vmatpush1.msra.mxu0 %v958
        %1151 = vmatprep.subr.mxu0 0.0
        %1152 = vmatpush1.msra.mxu0 %v959
        %1153 = vmatprep.subr.mxu0 0.0
        %1154 = vmatpush1.msra.mxu0 %v960
        %1155 = vmatprep.subr.mxu0 0.0
        %1156 = vmatpush1.msra.mxu0 %v961
        %1157 = vmatprep.subr.mxu0 0.0
        %1158 = vmatpush1.msra.mxu0 %v962
        %1159 = vmatprep.subr.mxu0 0.0
        %1160 = vmatpush1.msra.mxu0 %v963
        %1161 = vmatprep.subr.mxu0 0.0
        %1162 = vmatpush1.msra.mxu0 %v964
        %1163 = vmatprep.subr.mxu0 0.0
        %1164 = vmatpush1.msra.mxu0 %v965
        %1165 = vmatprep.subr.mxu0 0.0
        %1166 = vmatpush1.msra.mxu0 %v966
        %1167 = vmatprep.subr.mxu0 0.0
        %1168 = vmatpush1.msra.mxu0 %v967
        %1169 = vmatprep.subr.mxu0 0.0
        %1170 = vmatpush1.msra.mxu0 %v968
        %1171 = vmatprep.subr.mxu0 0.0
        %1172 = vmatpush1.msra.mxu0 %v969
        %1173 = vmatprep.subr.mxu0 0.0
        %1174 = vmatpush1.msra.mxu0 %v970
        %1175 = vmatprep.subr.mxu0 0.0
        %1176 = vmatpush1.msra.mxu0 %v971
        %1177 = vmatprep.subr.mxu0 0.0
        %1178 = vmatpush1.msra.mxu0 %v972
        %1179 = vmatprep.subr.mxu0 0.0
        %1180 = vmatpush1.msra.mxu0 %v973
        %1181 = vmatprep.subr.mxu0 0.0
        %1182 = vmatpush1.msra.mxu0 %v974
        %1183 = vmatprep.subr.mxu0 0.0
        %1184 = vmatpush1.msra.mxu0 %v975
        %1185 = vmatprep.subr.mxu0 0.0
        %1186 = vmatpush1.msra.mxu0 %v976
        %1187 = vmatprep.subr.mxu0 0.0
        %1188 = vmatpush1.msra.mxu0 %v977
        %1189 = vmatprep.subr.mxu0 0.0
        %1190 = vmatpush1.msra.mxu0 %v978
        %1191 = vmatprep.subr.mxu0 0.0
        %1192 = vmatpush1.msra.mxu0 %v979
        %1193 = vmatprep.subr.mxu0 0.0
        %1194 = vmatpush1.msra.mxu0 %v980
        %1195 = vmatprep.subr.mxu0 0.0
        %1196 = vmatpush1.msra.mxu0 %v981
        %1197 = vmatprep.subr.mxu0 0.0
        %1198 = vmatpush1.msra.mxu0 %v982
        %1199 = vmatprep.subr.mxu0 0.0
        %1200 = vmatpush1.msra.mxu0 %v983
        %1201 = vmatprep.subr.mxu0 0.0
        %1202 = vmatpush1.msra.mxu0 %v984
        %1203 = vmatprep.subr.mxu0 0.0
        %1204 = vmatpush1.msra.mxu0 %v985
        %1205 = vmatprep.mubr.f32.mxu0 %v901
        %1206 = vmatmul.mubr.f32.gmra.mrb[0].mxu0 %v895
        %v1207 = vpop.f32.mrb[0].mxu0
        %v1208 = vadd.f32 %v1133, %v1207
        %v1209 = vpop.f32.mrb[0].mxu0
        %1210 = vmatprep.mubr.f32.mxu0 %v902
        %1211 = vmatmul.mubr.f32.gmra.mrb[0].mxu0 %v896
        %v1212 = vpop.f32.mrb[0].mxu0
        %v1213 = vadd.f32 %v1138, %v1212
        %v1214 = vpop.f32.mrb[0].mxu0
        %1215 = vdwg.mxu0
        %1216 = vmatprep.subr.mxu0 0.0
        %1217 = vmatpush1.msra.mxu0 %v986
        %1218 = vmatprep.subr.mxu0 0.0
        %1219 = vmatpush1.msra.mxu0 %v987
        %1220 = vmatprep.subr.mxu0 0.0
        %1221 = vmatpush1.msra.mxu0 %v988
        %1222 = vmatprep.subr.mxu0 0.0
        %1223 = vmatpush1.msra.mxu0 %v989
        %1224 = vmatprep.subr.mxu0 0.0
        %1225 = vmatpush1.msra.mxu0 %v990
        %1226 = vmatprep.subr.mxu0 0.0
        %1227 = vmatpush1.msra.mxu0 %v991
        %1228 = vmatprep.subr.mxu0 0.0
        %1229 = vmatpush1.msra.mxu0 %v992
        %1230 = vmatprep.subr.mxu0 0.0
        %1231 = vmatpush1.msra.mxu0 %v993
        %1232 = vmatprep.subr.mxu0 0.0
        %1233 = vmatpush1.msra.mxu0 %v994
        %1234 = vmatprep.subr.mxu0 0.0
        %1235 = vmatpush1.msra.mxu0 %v995
        %1236 = vmatprep.subr.mxu0 0.0
        %1237 = vmatpush1.msra.mxu0 %v996
        %1238 = vmatprep.subr.mxu0 0.0
        %1239 = vmatpush1.msra.mxu0 %v997
        %1240 = vmatprep.subr.mxu0 0.0
        %1241 = vmatpush1.msra.mxu0 %v998
        %1242 = vmatprep.subr.mxu0 0.0
        %1243 = vmatpush1.msra.mxu0 %v999
        %1244 = vmatprep.subr.mxu0 0.0
        %1245 = vmatpush1.msra.mxu0 %v1000
        %1246 = vmatprep.subr.mxu0 0.0
        %1247 = vmatpush1.msra.mxu0 %v1001
        %1248 = vmatprep.subr.mxu0 0.0
        %1249 = vmatpush1.msra.mxu0 %v1002
        %1250 = vmatprep.subr.mxu0 0.0
        %1251 = vmatpush1.msra.mxu0 %v1003
        %1252 = vmatprep.subr.mxu0 0.0
        %1253 = vmatpush1.msra.mxu0 %v1004
        %1254 = vmatprep.subr.mxu0 0.0
        %1255 = vmatpush1.msra.mxu0 %v1005
        %1256 = vmatprep.subr.mxu0 0.0
        %1257 = vmatpush1.msra.mxu0 %v1006
        %1258 = vmatprep.subr.mxu0 0.0
        %1259 = vmatpush1.msra.mxu0 %v1007
        %1260 = vmatprep.subr.mxu0 0.0
        %1261 = vmatpush1.msra.mxu0 %v1008
        %1262 = vmatprep.subr.mxu0 0.0
        %1263 = vmatpush1.msra.mxu0 %v1009
        %1264 = vmatprep.subr.mxu0 0.0
        %1265 = vmatpush1.msra.mxu0 %v1010
        %1266 = vmatprep.subr.mxu0 0.0
        %1267 = vmatpush1.msra.mxu0 %v1011
        %1268 = vmatprep.subr.mxu0 0.0
        %1269 = vmatpush1.msra.mxu0 %v1012
        %1270 = vmatprep.subr.mxu0 0.0
        %1271 = vmatpush1.msra.mxu0 %v1013
        %1272 = vmatprep.subr.mxu0 0.0
        %1273 = vmatpush1.msra.mxu0 %v1014
        %1274 = vmatprep.subr.mxu0 0.0
        %1275 = vmatpush1.msra.mxu0 %v1015
        %1276 = vmatprep.subr.mxu0 0.0
        %1277 = vmatpush1.msra.mxu0 %v1016
        %1278 = vmatprep.subr.mxu0 0.0
        %1279 = vmatpush1.msra.mxu0 %v1017
        %1280 = vmatprep.mubr.f32.mxu0 %v907
        %1281 = vmatmul.mubr.f32.gmra.mrb[0].mxu0 %v871
        %v1282 = vpop.f32.mrb[0].mxu0
        %v1283 = vadd.f32 %v1208, %v1282
        %v1284 = vpop.f32.mrb[0].mxu0
        %1285 = vmatprep.mubr.f32.mxu0 %v908
        %1286 = vmatmul.mubr.f32.gmra.mrb[0].mxu0 %v872
        %v1287 = vpop.f32.mrb[0].mxu0
        %v1288 = vadd.f32 %v1213, %v1287
        %v1289 = vpop.f32.mrb[0].mxu0
        %1290 = vdwg.mxu0
        %1291 = vmatprep.subr.mxu0 0.0
        %1292 = vmatpush1.msra.mxu0 %v1018
        %1293 = vmatprep.subr.mxu0 0.0
        %1294 = vmatpush1.msra.mxu0 %v1019
        %1295 = vmatprep.subr.mxu0 0.0
        %1296 = vmatpush1.msra.mxu0 %v1020
        %1297 = vmatprep.subr.mxu0 0.0
        %1298 = vmatpush1.msra.mxu0 %v1021
        %1299 = vmatprep.subr.mxu0 0.0
        %1300 = vmatpush1.msra.mxu0 %v1022
        %1301 = vmatprep.subr.mxu0 0.0
        %1302 = vmatpush1.msra.mxu0 %v1023
        %1303 = vmatprep.subr.mxu0 0.0
        %1304 = vmatpush1.msra.mxu0 %v1024
        %1305 = vmatprep.subr.mxu0 0.0
        %1306 = vmatpush1.msra.mxu0 %v1025
        %1307 = vmatprep.subr.mxu0 0.0
        %1308 = vmatpush1.msra.mxu0 %v1026
        %1309 = vmatprep.subr.mxu0 0.0
        %1310 = vmatpush1.msra.mxu0 %v1027
        %1311 = vmatprep.subr.mxu0 0.0
        %1312 = vmatpush1.msra.mxu0 %v1028
        %1313 = vmatprep.subr.mxu0 0.0
        %1314 = vmatpush1.msra.mxu0 %v1029
        %1315 = vmatprep.subr.mxu0 0.0
        %1316 = vmatpush1.msra.mxu0 %v1030
        %1317 = vmatprep.subr.mxu0 0.0
        %1318 = vmatpush1.msra.mxu0 %v1031
        %1319 = vmatprep.subr.mxu0 0.0
        %1320 = vmatpush1.msra.mxu0 %v1032
        %1321 = vmatprep.subr.mxu0 0.0
        %1322 = vmatpush1.msra.mxu0 %v1033
        %1323 = vmatprep.subr.mxu0 0.0
        %1324 = vmatpush1.msra.mxu0 %v1034
        %1325 = vmatprep.subr.mxu0 0.0
        %1326 = vmatpush1.msra.mxu0 %v1035
        %1327 = vmatprep.subr.mxu0 0.0
        %1328 = vmatpush1.msra.mxu0 %v1036
        %1329 = vmatprep.subr.mxu0 0.0
        %1330 = vmatpush1.msra.mxu0 %v1037
        %1331 = vmatprep.subr.mxu0 0.0
        %1332 = vmatpush1.msra.mxu0 %v1038
        %1333 = vmatprep.subr.mxu0 0.0
        %1334 = vmatpush1.msra.mxu0 %v1039
        %1335 = vmatprep.subr.mxu0 0.0
        %1336 = vmatpush1.msra.mxu0 %v1040
        %1337 = vmatprep.subr.mxu0 0.0
        %1338 = vmatpush1.msra.mxu0 %v1041
        %1339 = vmatprep.subr.mxu0 0.0
        %1340 = vmatpush1.msra.mxu0 %v1042
        %1341 = vmatprep.subr.mxu0 0.0
        %1342 = vmatpush1.msra.mxu0 %v1043
        %1343 = vmatprep.subr.mxu0 0.0
        %1344 = vmatpush1.msra.mxu0 %v1044
        %1345 = vmatprep.subr.mxu0 0.0
        %1346 = vmatpush1.msra.mxu0 %v1045
        %1347 = vmatprep.subr.mxu0 0.0
        %1348 = vmatpush1.msra.mxu0 %v1046
        %1349 = vmatprep.subr.mxu0 0.0
        %1350 = vmatpush1.msra.mxu0 %v1047
        %1351 = vmatprep.subr.mxu0 0.0
        %1352 = vmatpush1.msra.mxu0 %v1048
        %1353 = vmatprep.subr.mxu0 0.0
        %1354 = vmatpush1.msra.mxu0 %v1049
        %1355 = vmatprep.mubr.f32.mxu0 %v883
        %1356 = vmatmul.mubr.f32.gmra.mrb[0].mxu0 %v913
        %v1357 = vpop.f32.mrb[0].mxu0
        %v1358 = vadd.f32 %v1283, %v1357
        %v1359 = vpop.f32.mrb[0].mxu0
        %1360 = vmatprep.mubr.f32.mxu0 %v884
        %1361 = vmatmul.mubr.f32.gmra.mrb[0].mxu0 %v914
        %v1362 = vpop.f32.mrb[0].mxu0
        %v1363 = vadd.f32 %v1288, %v1362
        %v1364 = vpop.f32.mrb[0].mxu0
        %1365 = vdwg.mxu0
        %1366 = vmatprep.subr.mxu0 0.0
        %1367 = vmatpush1.msra.mxu0 %v1050
        %1368 = vmatprep.subr.mxu0 0.0
        %1369 = vmatpush1.msra.mxu0 %v1051
        %1370 = vmatprep.subr.mxu0 0.0
        %1371 = vmatpush1.msra.mxu0 %v1052
        %1372 = vmatprep.subr.mxu0 0.0
        %1373 = vmatpush1.msra.mxu0 %v1053
        %1374 = vmatprep.subr.mxu0 0.0
        %1375 = vmatpush1.msra.mxu0 %v1054
        %1376 = vmatprep.subr.mxu0 0.0
        %1377 = vmatpush1.msra.mxu0 %v1055
        %1378 = vmatprep.subr.mxu0 0.0
        %1379 = vmatpush1.msra.mxu0 %v1056
        %1380 = vmatprep.subr.mxu0 0.0
        %1381 = vmatpush1.msra.mxu0 %v1057
        %1382 = vmatprep.subr.mxu0 0.0
        %1383 = vmatpush1.msra.mxu0 %v1058
        %1384 = vmatprep.subr.mxu0 0.0
        %1385 = vmatpush1.msra.mxu0 %v1059
        %1386 = vmatprep.subr.mxu0 0.0
        %1387 = vmatpush1.msra.mxu0 %v1060
        %1388 = vmatprep.subr.mxu0 0.0
        %1389 = vmatpush1.msra.mxu0 %v1061
        %1390 = vmatprep.subr.mxu0 0.0
        %1391 = vmatpush1.msra.mxu0 %v1062
        %1392 = vmatprep.subr.mxu0 0.0
        %1393 = vmatpush1.msra.mxu0 %v1063
        %1394 = vmatprep.subr.mxu0 0.0
        %1395 = vmatpush1.msra.mxu0 %v1064
        %1396 = vmatprep.subr.mxu0 0.0
        %1397 = vmatpush1.msra.mxu0 %v1065
        %1398 = vmatprep.subr.mxu0 0.0
        %1399 = vmatpush1.msra.mxu0 0.0
        %1400 = vmatprep.subr.mxu0 0.0
        %1401 = vmatpush1.msra.mxu0 0.0
        %1402 = vmatprep.subr.mxu0 0.0
        %1403 = vmatpush1.msra.mxu0 0.0
        %1404 = vmatprep.subr.mxu0 0.0
        %1405 = vmatpush1.msra.mxu0 0.0
        %1406 = vmatprep.subr.mxu0 0.0
        %1407 = vmatpush1.msra.mxu0 0.0
        %1408 = vmatprep.subr.mxu0 0.0
        %1409 = vmatpush1.msra.mxu0 0.0
        %1410 = vmatprep.subr.mxu0 0.0
        %1411 = vmatpush1.msra.mxu0 0.0
        %1412 = vmatprep.subr.mxu0 0.0
        %1413 = vmatpush1.msra.mxu0 0.0
        %1414 = vmatprep.subr.mxu0 0.0
        %1415 = vmatpush1.msra.mxu0 0.0
        %1416 = vmatprep.subr.mxu0 0.0
        %1417 = vmatpush1.msra.mxu0 0.0
        %1418 = vmatprep.subr.mxu0 0.0
        %1419 = vmatpush1.msra.mxu0 0.0
        %1420 = vmatprep.subr.mxu0 0.0
        %1421 = vmatpush1.msra.mxu0 0.0
        %1422 = vmatprep.subr.mxu0 0.0
        %1423 = vmatpush1.msra.mxu0 0.0
        %1424 = vmatprep.subr.mxu0 0.0
        %1425 = vmatpush1.msra.mxu0 0.0
        %1426 = vmatprep.subr.mxu0 0.0
        %1427 = vmatpush1.msra.mxu0 0.0
        %1428 = vmatprep.subr.mxu0 0.0
        %1429 = vmatpush1.msra.mxu0 0.0
        %1430 = vmatprep.mubr.f32.mxu0 0.0
        %1431 = vmatmul.mubr.f32.gmra.mrb[0].mxu0 %v919
        %v1432 = vpop.f32.mrb[0].mxu0
        %v1433 = vadd.f32 %v1358, %v1432
        %v1434 = vpop.f32.mrb[0].mxu0
        %1435 = vmatprep.mubr.f32.mxu0 0.0
        %1436 = vmatmul.mubr.f32.gmra.mrb[0].mxu0 %v920
        %v1437 = vpop.f32.mrb[0].mxu0
        %v1438 = vadd.f32 %v1363, %v1437
        %v1439 = vpop.f32.mrb[0].mxu0
        %1440 = vdwg.mxu0
        %v1441 = vmax.f32 %v1433, 0.0
        %v1442 = vmax.f32 %v1438, 0.0
        %s1443 = scalar_lea.vmem %s2, 64
        %v1444 = vld [vmem:[%s1443] sm:$0xff]
        %v1445 = vld [vmem:[%s1443 + $0x8] sm:$0xff]
        %v1446 = vld [vmem:[%s1443 + $0x10] sm:$0xff]
        %v1447 = vld [vmem:[%s1443 + $0x18] sm:$0xff]
        %v1448 = vld [vmem:[%s1443 + $0x20] sm:$0xff]
        %v1449 = vld [vmem:[%s1443 + $0x28] sm:$0xff]
        %v1450 = vld [vmem:[%s1443 + $0x30] sm:$0xff]
        %v1451 = vld [vmem:[%s1443 + $0x38] sm:$0xff]
        %v1453 = vsel %vm787, %v1441, 0
        %v1456 = vsel %vm787, %v1442, 0
        %1458 = vmatprep.subr.mxu0 0.0
        %1459 = vmatpush1.msra.mxu0 %v1444
        %1460 = vmatprep.subr.mxu0 0.0
        %1461 = vmatpush1.msra.mxu0 %v1445
        %1462 = vmatprep.subr.mxu0 0.0
        %1463 = vmatpush1.msra.mxu0 %v1446
        %1464 = vmatprep.subr.mxu0 0.0
        %1465 = vmatpush1.msra.mxu0 %v1447
        %1466 = vmatprep.subr.mxu0 0.0
        %1467 = vmatpush1.msra.mxu0 %v1448
        %1468 = vmatprep.subr.mxu0 0.0
        %1469 = vmatpush1.msra.mxu0 %v1449
        %1470 = vmatprep.subr.mxu0 0.0
        %1471 = vmatpush1.msra.mxu0 %v1450
        %1472 = vmatprep.subr.mxu0 0.0
        %1473 = vmatpush1.msra.mxu0 %v1451
        %1474 = vmatprep.subr.mxu0 0.0
        %1475 = vmatpush1.msra.mxu0 0.0
        %1476 = vmatprep.subr.mxu0 0.0
        %1477 = vmatpush1.msra.mxu0 0.0
        %1478 = vmatprep.subr.mxu0 0.0
        %1479 = vmatpush1.msra.mxu0 0.0
        %1480 = vmatprep.subr.mxu0 0.0
        %1481 = vmatpush1.msra.mxu0 0.0
        %1482 = vmatprep.subr.mxu0 0.0
        %1483 = vmatpush1.msra.mxu0 0.0
        %1484 = vmatprep.subr.mxu0 0.0
        %1485 = vmatpush1.msra.mxu0 0.0
        %1486 = vmatprep.subr.mxu0 0.0
        %1487 = vmatpush1.msra.mxu0 0.0
        %1488 = vmatprep.subr.mxu0 0.0
        %1489 = vmatpush1.msra.mxu0 0.0
        %1490 = vmatprep.subr.mxu0 0.0
        %1491 = vmatpush1.msra.mxu0 0.0
        %1492 = vmatprep.subr.mxu0 0.0
        %1493 = vmatpush1.msra.mxu0 0.0
        %1494 = vmatprep.subr.mxu0 0.0
        %1495 = vmatpush1.msra.mxu0 0.0
        %1496 = vmatprep.subr.mxu0 0.0
        %1497 = vmatpush1.msra.mxu0 0.0
        %1498 = vmatprep.subr.mxu0 0.0
        %1499 = vmatpush1.msra.mxu0 0.0
        %1500 = vmatprep.subr.mxu0 0.0
        %1501 = vmatpush1.msra.mxu0 0.0
        %1502 = vmatprep.subr.mxu0 0.0
        %1503 = vmatpush1.msra.mxu0 0.0
        %1504 = vmatprep.subr.mxu0 0.0
        %1505 = vmatpush1.msra.mxu0 0.0
        %1506 = vmatprep.subr.mxu0 0.0
        %1507 = vmatpush1.msra.mxu0 0.0
        %1508 = vmatprep.subr.mxu0 0.0
        %1509 = vmatpush1.msra.mxu0 0.0
        %1510 = vmatprep.subr.mxu0 0.0
        %1511 = vmatpush1.msra.mxu0 0.0
        %1512 = vmatprep.subr.mxu0 0.0
        %1513 = vmatpush1.msra.mxu0 0.0
        %1514 = vmatprep.subr.mxu0 0.0
        %1515 = vmatpush1.msra.mxu0 0.0
        %1516 = vmatprep.subr.mxu0 0.0
        %1517 = vmatpush1.msra.mxu0 0.0
        %1518 = vmatprep.subr.mxu0 0.0
        %1519 = vmatpush1.msra.mxu0 0.0
        %1520 = vmatprep.subr.mxu0 0.0
        %1521 = vmatpush1.msra.mxu0 0.0
        %1522 = vmatprep.mubr.f32.mxu0 0.0
        %1523 = vmatmul.mubr.f32.gmra.mrb[0].mxu0 %v1453
        %v1524 = vpop.f32.mrb[0].mxu0
        %v1525 = vadd.f32 0.0, %v1524
        %v1526 = vpop.f32.mrb[0].mxu0
        %1527 = vmatprep.mubr.f32.mxu0 0.0
        %1528 = vmatmul.mubr.f32.gmra.mrb[0].mxu0 %v1456
        %v1529 = vpop.f32.mrb[0].mxu0
        %v1530 = vadd.f32 0.0, %v1529
        %v1531 = vpop.f32.mrb[0].mxu0
        %1532 = vdwg.mxu0
        %v1533 = vadd.f32 %v869, %v1525
        %v1534 = vadd.f32 %v870, %v1530
        %v1535 = vmax.f32 %v1533, 0.0
        %v1536 = vmax.f32 %v1534, 0.0
        %1537 = vst [vmem:[%s163] sm:$0xff] %v1535
        %1538 = vst [vmem:[%s163 + $0x8] sm:$0xff] %v1536
        %s1539 = sand.u32 %s93, 1
        %s1540 = scalar_lea.sflag [#allocation3], %s1539
        %s1541 = sand.u32 %s93, 1
        %s1542 = smul.addr %s1541, 16
        %s1543 = scalar_lea.vmem [#allocation2], %s1542
        // Predicated region
        $region33: #{tpu_custom_call.1} parent=31 // pred_check
          %p1544 = pneg %p103
        $region34: #{tpu_custom_call.1} parent=31 // pred_check_branch
          %1546 = sbr.rel (%p1544) target = $region36
        $region35: #{tpu_custom_call.1} parent=31 // pred_region
          %s1548 = ssub.s32 256, 256
          %1549 = vsyncadd %s1540, %s1548
          %s1550 = smul.addr %s17, 2
          %s1551 = smul.addr %s1550, 128
          %s1552 = scalar_lea.hbm %s3, %s1551
          %s1553 = sshll.u32 %s1543, 4
          %s1554 = int_to_ptr.vmem [resolvable:$true] %s1553
          %1559 = dma.vmem_to_hbm [thread:$0]  %s1554, 256, %s1552, %s1540, 128, 128, 8
        $region36: #{tpu_custom_call.1} parent=31 // pred_fallthru
          _
      $region32: #{tpu_custom_call.1} parent=5 // pred_fallthru
        _
      %p1560 = scmp.le.s32.totalorder 2, %s12
      // Predicated region
      $region37: #{tpu_custom_call.1} parent=5 // pred_check
        %p1561 = pneg %p1560
      $region38: #{tpu_custom_call.1} parent=5 // pred_check_branch
        %1563 = sbr.rel (%p1561) target = $region40
      $region39: #{tpu_custom_call.1} parent=5 // pred_region
        %s1564 = ssub.s32 %s12, 2
        // Predicated region
        $region41: #{tpu_custom_call.1} parent=39 // pred_check
          %p1565 = pneg %p109
        $region42: #{tpu_custom_call.1} parent=39 // pred_check_branch
          %1567 = sbr.rel (%p1565) target = $region44
        $region43: #{tpu_custom_call.1} parent=39 // pred_region
          %s1568 = sand.u32 %s94, 1
          %s1569 = scalar_lea.sflag [#allocation3], %s1568
          %s1570 = sand.u32 %s94, 1
          %s1571 = smul.addr %s1570, 16
          %s1572 = scalar_lea.vmem [#allocation2], %s1571
          %1573 = dma.done %s1569, 256
        $region44: #{tpu_custom_call.1} parent=39 // pred_fallthru
          _
      $region40: #{tpu_custom_call.1} parent=5 // pred_fallthru
        _
    $region6: #{tpu_custom_call.1} parent=1 // loop_footer
      %s16 = sadd.s32 1, %s12
    $region7: #{tpu_custom_call.1} parent=1 // loop_footer_branch
      %11 = sbr.rel target = $region3
    $region8: #{tpu_custom_call.1} parent=1 // loop_exit
      _
    %1574 = vsyncpa [#allocation3], 1
    %s1575 = scalar_lea.sflag [#allocation3], 1
    %1576 = vsyncpa %s1575, 1

</llo_original>
